<compile_context>
chip_gen: v6e
topology: v6e:2x2x1
jax: 0.10.0
libtpu: 0.0.40
codegen_flags: <defaults>
</compile_context>

<pallas_src>
import functools

import jax
import jax.numpy as jnp
import numpy as np
from jax import lax
from jax.experimental import pallas as pl
from jax.experimental.pallas import tpu as pltpu


def _bottleneck_kernel(x_ref, xup_ref, xdn_ref,
                       w1_ref, s1_ref, b1_ref,
                       w2_ref, s2_ref, b2_ref,
                       w3_ref, s3_ref, b3_ref,
                       out_ref, h1pad_ref, imcol_ref, *, W, TH):
    THW = TH * W
    P = w1_ref.shape[1]

    i = pl.program_id(1)
    is_first = i == 0
    is_last = i == pl.num_programs(1) - 1

    x = x_ref[0]                                   # (THW, Cin) f32 (residual)
    w1 = w1_ref[...]                               # (Cin, P) bf16
    s1 = s1_ref[...]
    b1 = b1_ref[...]

    def conv1_bn_relu(xr):
        h = jnp.dot(xr.astype(jnp.bfloat16), w1,
                    preferred_element_type=jnp.float32)
        return jnp.maximum(h * s1 + b1, 0.0)

    # ---- conv1 (1x1) + bn1 + relu for the tile and its 1-row halos ----------
    h1 = conv1_bn_relu(x)                          # (THW, P) f32
    up_scale = jnp.where(is_first, 0.0, 1.0)       # zero-pad at image top
    dn_scale = jnp.where(is_last, 0.0, 1.0)        # zero-pad at image bottom
    h1_up = conv1_bn_relu(xup_ref[0]) * up_scale   # (W, P)
    h1_dn = conv1_bn_relu(xdn_ref[0]) * dn_scale   # (W, P)

    # ---- padded h1 scratch --------------------------------------------------
    # Layout: [W slack | W top halo | THW main | W bottom halo | W slack].
    # Taps only ever read indices [W-1, 3W+THW]; each slack region is touched
    # by exactly one element and that element is always border-masked below.
    h1pad_ref[pl.ds(W, W), :] = h1_up
    h1pad_ref[pl.ds(2 * W, THW), :] = h1
    h1pad_ref[pl.ds(2 * W + THW, W), :] = h1_dn

    # ---- conv2 (3x3, stride=1, pad=1): im2col + one matmul with K = 9*P -----
    col = lax.broadcasted_iota(jnp.int32, (THW, 1), 0) % W     # x-coordinate
    left_ok = col >= 1            # valid source for dx = -1 taps
    right_ok = col < (W - 1)      # valid source for dx = +1 taps

    for ky in range(3):
        for kx in range(3):
            t = ky * 3 + kx
            start = (ky + 1) * W + (kx - 1)        # static offset into scratch
            tap = h1pad_ref[pl.ds(start, THW), :]  # (THW, P) f32
            if kx == 0:
                tap = jnp.where(left_ok, tap, 0.0)
            elif kx == 2:
                tap = jnp.where(right_ok, tap, 0.0)
            imcol_ref[:, t * P:(t + 1) * P] = tap.astype(jnp.bfloat16)

    acc = jnp.dot(imcol_ref[...], w2_ref[...],
                  preferred_element_type=jnp.float32)          # (THW, P)
    h2 = jnp.maximum(acc * s2_ref[...] + b2_ref[...], 0.0)

    # ---- conv3 (1x1) + bn3 + residual + relu --------------------------------
    h3 = jnp.dot(h2.astype(jnp.bfloat16), w3_ref[...],
                 preferred_element_type=jnp.float32)           # (THW, Cout)
    h3 = h3 * s3_ref[...] + b3_ref[...]
    out_ref[0] = jnp.maximum(h3 + x, 0.0)


def _pick_row_tile(H, W):
    """Largest row tile with ~<=2048 spatial positions and H % tile == 0."""
    target = max(1, 2048 // max(W, 1))
    best = 1
    for th in range(1, H + 1):
        if H % th == 0 and th <= target:
            best = th
    return best


def _vmem_estimate_bytes(TH, W, Cin, P, Cout):
    thw = TH * W
    blocks = thw * Cin * 4 + 2 * W * Cin * 4 + thw * Cout * 4
    weights = (Cin * P + 9 * P * P + P * Cout) * 2 + (4 * P + 2 * Cout) * 4
    scratch = (thw + 4 * W) * P * 4 + thw * 9 * P * 2
    return 2 * (blocks + weights) + scratch        # ~double-buffered pipeline


def bottleneck_forward(x_nhwc, params, *, row_tile=None):
    N, H, W, Cin = x_nhwc.shape
    HW = H * W
    w1, s1, b1, w2, s2, b2, w3, s3, b3 = params
    P = w1.shape[1]
    Cout = w3.shape[1]
    assert Cout == Cin, "identity residual requires inplanes == planes*expansion"
    # TODO(synk): support W % 8 != 0 (needs a padded layout for the 1-row halo blocks).
    assert W % 8 == 0, "this kernel assumes W is a multiple of 8"

    TH = _pick_row_tile(H, W) if row_tile is None else row_tile
    assert H % TH == 0 and (TH * W) % 8 == 0
    nt = H // TH
    THW = TH * W

    xf = x_nhwc.reshape(N, HW, Cin)

    const = lambda n, i: (0, 0)
    grid_spec = pltpu.PrefetchScalarGridSpec(
        num_scalar_prefetch=0,
        grid=(N, nt),
        in_specs=[
            pl.BlockSpec((1, THW, Cin), lambda n, i: (n, i, 0)),
            # 1-row halo blocks (row above / below the tile); clamped at the
            # image border and zeroed inside the kernel.
            pl.BlockSpec((1, W, Cin),
                         lambda n, i: (n, jnp.maximum(i * TH - 1, 0), 0)),
            pl.BlockSpec((1, W, Cin),
                         lambda n, i: (n, jnp.minimum(i * TH + TH, H - 1), 0)),
            pl.BlockSpec((Cin, P), const),
            pl.BlockSpec((1, P), const),
            pl.BlockSpec((1, P), const),
            pl.BlockSpec((9 * P, P), const),
            pl.BlockSpec((1, P), const),
            pl.BlockSpec((1, P), const),
            pl.BlockSpec((P, Cout), const),
            pl.BlockSpec((1, Cout), const),
            pl.BlockSpec((1, Cout), const),
        ],
        out_specs=pl.BlockSpec((1, THW, Cout), lambda n, i: (n, i, 0)),
        scratch_shapes=[
            pltpu.VMEM((THW + 4 * W, P), jnp.float32),     # zero-haloed h1
            pltpu.VMEM((THW, 9 * P), jnp.bfloat16),        # im2col tile
        ],
    )

    vmem_limit = int(min(max(8 * _vmem_estimate_bytes(TH, W, Cin, P, Cout),
                             8 << 20), 48 << 20))
    out = pl.pallas_call(
        functools.partial(_bottleneck_kernel, W=W, TH=TH),
        out_shape=jax.ShapeDtypeStruct((N, HW, Cout), jnp.float32),
        grid_spec=grid_spec,
        compiler_params=pltpu.CompilerParams(
            dimension_semantics=("parallel", "parallel"),
            vmem_limit_bytes=vmem_limit),
    )(xf, xf, xf, w1, s1, b1, w2, s2, b2, w3, s3, b3)

    return out.reshape(N, H, W, Cout)


def _ref_forward(x_nhwc, params):
    """Pure-JAX reference (XLA conv) with matching bf16-matmul precision."""
    w1, s1, b1, w2flat, s2, b2, w3, s3, b3 = params
    P = w1.shape[1]
    w2_hwio = w2flat.reshape(3, 3, P, P)

    h = jnp.einsum('nhwc,cp->nhwp', x_nhwc.astype(jnp.bfloat16), w1,
                   preferred_element_type=jnp.float32)
    h = jnp.maximum(h * s1 + b1, 0.0)
    h = lax.conv_general_dilated(h.astype(jnp.bfloat16), w2_hwio,
                                 window_strides=(1, 1),
                                 padding=((1, 1), (1, 1)),
                                 dimension_numbers=('NHWC', 'HWIO', 'NHWC'),
                                 preferred_element_type=jnp.float32)
    h = jnp.maximum(h * s2 + b2, 0.0)
    h = jnp.einsum('nhwp,pc->nhwc', h.astype(jnp.bfloat16), w3,
                   preferred_element_type=jnp.float32)
    h = h * s3 + b3
    return jnp.maximum(h + x_nhwc, 0.0)


def _make_params(key, inplanes, planes, expansion=4):
    cout = planes * expansion
    ks = jax.random.split(key, 15)

    def bn_fold(kg, kb, km, kv, c):
        gamma = 1.0 + 0.1 * jax.random.normal(kg, (c,), jnp.float32)
        beta = 0.1 * jax.random.normal(kb, (c,), jnp.float32)
        mean = 0.1 * jax.random.normal(km, (c,), jnp.float32)
        var = jax.random.uniform(kv, (c,), jnp.float32, 0.5, 1.5)
        eps = 1e-5
        s = gamma / jnp.sqrt(var + eps)
        b = beta - mean * s
        return s.reshape(1, c), b.reshape(1, c)

    # Conv weights stored as (Cin, Cout) / (ky, kx, Cin, Cout) (PyTorch OIHW
    # transposed), cast to bf16 for the MXU.
    w1 = (0.1 * jax.random.normal(ks[0], (inplanes, planes), jnp.float32)
          ).astype(jnp.bfloat16)
    w2 = (0.1 * jax.random.normal(ks[1], (3, 3, planes, planes), jnp.float32)
          ).astype(jnp.bfloat16)
    w3 = (0.1 * jax.random.normal(ks[2], (planes, cout), jnp.float32)
          ).astype(jnp.bfloat16)
    s1, b1 = bn_fold(ks[3], ks[4], ks[5], ks[6], planes)
    s2, b2 = bn_fold(ks[7], ks[8], ks[9], ks[10], planes)
    s3, b3 = bn_fold(ks[11], ks[12], ks[13], ks[14], cout)
    return (w1, s1, b1, w2.reshape(9 * planes, planes), s2, b2, w3, s3, b3)


if __name__ == "__main__":
    # Bottleneck(inplanes=32, planes=8) -> output channels = 32, stride=1,
    # downsample=None (identity residual).
    N, inplanes, planes, H, W = 2, 32, 8, 8, 8

    key = jax.random.PRNGKey(0)
    kx, kp = jax.random.split(key)
    x_nchw = jax.random.normal(kx, (N, inplanes, H, W), jnp.float32)  # PyTorch layout
    x_nhwc = jnp.transpose(x_nchw, (0, 2, 3, 1))                      # kernel layout

    params = _make_params(kp, inplanes, planes)
    ref = jax.block_until_ready(_ref_forward(x_nhwc, params))

    # Exercise multi-tile halo exchange (interior + border tiles) and the
    # single-tile (whole-image) path.
    for row_tile in (2, 4, 8):
        out = jax.block_until_ready(
            bottleneck_forward(x_nhwc, params, row_tile=row_tile))
        np.testing.assert_allclose(np.asarray(out), np.asarray(ref),
                                   rtol=2e-2, atol=2e-2)

    print("KERNEL_OK")
</pallas_src>

<mosaic_0001>
module attributes {stable_mosaic.version = 11 : i64} {
  func.func @_bottleneck_kernel(%arg0: i32, %arg1: i32, %arg2: memref<1x16x32xf32, #tpu.memory_space<vmem>>, %arg3: memref<1x8x32xf32, #tpu.memory_space<vmem>>, %arg4: memref<1x8x32xf32, #tpu.memory_space<vmem>>, %arg5: memref<32x8xbf16, #tpu.memory_space<vmem>>, %arg6: memref<1x8xf32, #tpu.memory_space<vmem>>, %arg7: memref<1x8xf32, #tpu.memory_space<vmem>>, %arg8: memref<72x8xbf16, #tpu.memory_space<vmem>>, %arg9: memref<1x8xf32, #tpu.memory_space<vmem>>, %arg10: memref<1x8xf32, #tpu.memory_space<vmem>>, %arg11: memref<8x32xbf16, #tpu.memory_space<vmem>>, %arg12: memref<1x32xf32, #tpu.memory_space<vmem>>, %arg13: memref<1x32xf32, #tpu.memory_space<vmem>>, %arg14: memref<1x16x32xf32, #tpu.memory_space<vmem>>, %arg15: memref<48x8xf32, #tpu.memory_space<vmem>>, %arg16: memref<16x72xbf16, #tpu.memory_space<vmem>>) attributes {dimension_semantics = [#tpu.dimension_semantics<parallel>, #tpu.dimension_semantics<parallel>], iteration_bounds = array<i64: 2, 4>, scalar_prefetch = 0 : i64, scratch_operands = 2 : i64, tpu.core_type = #tpu.core_type<tc>, window_params = [{transform_indices = @transform_0, window_bounds = array<i64: 1, 16, 32>}, {transform_indices = @transform_1, window_bounds = array<i64: 1, 8, 32>}, {transform_indices = @transform_2, window_bounds = array<i64: 1, 8, 32>}, {pipeline_mode = #tpu.pipeline_mode<synchronous>, transform_indices = @transform_3, window_bounds = array<i64: 32, 8>}, {pipeline_mode = #tpu.pipeline_mode<synchronous>, transform_indices = @transform_4, window_bounds = array<i64: 1, 8>}, {pipeline_mode = #tpu.pipeline_mode<synchronous>, transform_indices = @transform_5, window_bounds = array<i64: 1, 8>}, {pipeline_mode = #tpu.pipeline_mode<synchronous>, transform_indices = @transform_6, window_bounds = array<i64: 72, 8>}, {pipeline_mode = #tpu.pipeline_mode<synchronous>, transform_indices = @transform_7, window_bounds = array<i64: 1, 8>}, {pipeline_mode = #tpu.pipeline_mode<synchronous>, transform_indices = @transform_8, window_bounds = array<i64: 1, 8>}, {pipeline_mode = #tpu.pipeline_mode<synchronous>, transform_indices = @transform_9, window_bounds = array<i64: 8, 32>}, {pipeline_mode = #tpu.pipeline_mode<synchronous>, transform_indices = @transform_10, window_bounds = array<i64: 1, 32>}, {pipeline_mode = #tpu.pipeline_mode<synchronous>, transform_indices = @transform_11, window_bounds = array<i64: 1, 32>}, {transform_indices = @transform_12, window_bounds = array<i64: 1, 16, 32>}]} {
    %c0_i32 = arith.constant 0 : i32
    %0 = arith.cmpi eq, %arg1, %c0_i32 : i32
    %c3_i32 = arith.constant 3 : i32
    %1 = arith.cmpi eq, %arg1, %c3_i32 : i32
    %c0 = arith.constant 0 : index
    %c0_0 = arith.constant 0 : index
    %c0_1 = arith.constant 0 : index
    %2 = vector.load %arg2[%c0, %c0_0, %c0_1] : memref<1x16x32xf32, #tpu.memory_space<vmem>>, vector<1x16x32xf32>
    %3 = vector.shape_cast %2 : vector<1x16x32xf32> to vector<16x32xf32>
    %c0_2 = arith.constant 0 : index
    %c0_3 = arith.constant 0 : index
    %4 = vector.load %arg5[%c0_2, %c0_3] : memref<32x8xbf16, #tpu.memory_space<vmem>>, vector<32x8xbf16>
    %c0_4 = arith.constant 0 : index
    %c0_5 = arith.constant 0 : index
    %5 = vector.load %arg6[%c0_4, %c0_5] : memref<1x8xf32, #tpu.memory_space<vmem>>, vector<1x8xf32>
    %c0_6 = arith.constant 0 : index
    %c0_7 = arith.constant 0 : index
    %6 = vector.load %arg7[%c0_6, %c0_7] : memref<1x8xf32, #tpu.memory_space<vmem>>, vector<1x8xf32>
    %7 = arith.truncf %3 : vector<16x32xf32> to vector<16x32xbf16>
    %cst = arith.constant dense<0.000000e+00> : vector<16x8xf32>
    %8 = tpu.matmul %7, %4, %cst {dimension_numbers = #tpu.dot_dimension_numbers<[1], [0], [0], [1], [0, 0, 1, 1], [], []>} : vector<16x32xbf16>, vector<32x8xbf16>, vector<16x8xf32> -> vector<16x8xf32>
    %9 = vector.broadcast %5 : vector<1x8xf32> to vector<16x8xf32>
    %10 = arith.mulf %8, %9 : vector<16x8xf32>
    %11 = vector.broadcast %6 : vector<1x8xf32> to vector<16x8xf32>
    %12 = arith.addf %10, %11 : vector<16x8xf32>
    %cst_8 = arith.constant 0.000000e+00 : f32
    %13 = vector.broadcast %cst_8 : f32 to vector<16x8xf32>
    %14 = arith.maximumf %12, %13 : vector<16x8xf32>
    %cst_9 = arith.constant 0.000000e+00 : f32
    %cst_10 = arith.constant 1.000000e+00 : f32
    %15 = arith.select %0, %cst_9, %cst_10 : f32
    %cst_11 = arith.constant 0.000000e+00 : f32
    %cst_12 = arith.constant 1.000000e+00 : f32
    %16 = arith.select %1, %cst_11, %cst_12 : f32
    %c0_13 = arith.constant 0 : index
    %c0_14 = arith.constant 0 : index
    %c0_15 = arith.constant 0 : index
    %17 = vector.load %arg3[%c0_13, %c0_14, %c0_15] : memref<1x8x32xf32, #tpu.memory_space<vmem>>, vector<1x8x32xf32>
    %18 = vector.shape_cast %17 : vector<1x8x32xf32> to vector<8x32xf32>
    %19 = arith.truncf %18 : vector<8x32xf32> to vector<8x32xbf16>
    %cst_16 = arith.constant dense<0.000000e+00> : vector<8x8xf32>
    %20 = tpu.matmul %19, %4, %cst_16 {dimension_numbers = #tpu.dot_dimension_numbers<[1], [0], [0], [1], [0, 0, 1, 1], [], []>} : vector<8x32xbf16>, vector<32x8xbf16>, vector<8x8xf32> -> vector<8x8xf32>
    %21 = vector.broadcast %5 : vector<1x8xf32> to vector<8x8xf32>
    %22 = arith.mulf %20, %21 : vector<8x8xf32>
    %23 = vector.broadcast %6 : vector<1x8xf32> to vector<8x8xf32>
    %24 = arith.addf %22, %23 : vector<8x8xf32>
    %cst_17 = arith.constant 0.000000e+00 : f32
    %25 = vector.broadcast %cst_17 : f32 to vector<8x8xf32>
    %26 = arith.maximumf %24, %25 : vector<8x8xf32>
    %27 = vector.broadcast %15 : f32 to vector<8x8xf32>
    %28 = arith.mulf %26, %27 : vector<8x8xf32>
    %c0_18 = arith.constant 0 : index
    %c0_19 = arith.constant 0 : index
    %c0_20 = arith.constant 0 : index
    %29 = vector.load %arg4[%c0_18, %c0_19, %c0_20] : memref<1x8x32xf32, #tpu.memory_space<vmem>>, vector<1x8x32xf32>
    %30 = vector.shape_cast %29 : vector<1x8x32xf32> to vector<8x32xf32>
    %31 = arith.truncf %30 : vector<8x32xf32> to vector<8x32xbf16>
    %cst_21 = arith.constant dense<0.000000e+00> : vector<8x8xf32>
    %32 = tpu.matmul %31, %4, %cst_21 {dimension_numbers = #tpu.dot_dimension_numbers<[1], [0], [0], [1], [0, 0, 1, 1], [], []>} : vector<8x32xbf16>, vector<32x8xbf16>, vector<8x8xf32> -> vector<8x8xf32>
    %33 = vector.broadcast %5 : vector<1x8xf32> to vector<8x8xf32>
    %34 = arith.mulf %32, %33 : vector<8x8xf32>
    %35 = vector.broadcast %6 : vector<1x8xf32> to vector<8x8xf32>
    %36 = arith.addf %34, %35 : vector<8x8xf32>
    %cst_22 = arith.constant 0.000000e+00 : f32
    %37 = vector.broadcast %cst_22 : f32 to vector<8x8xf32>
    %38 = arith.maximumf %36, %37 : vector<8x8xf32>
    %39 = vector.broadcast %16 : f32 to vector<8x8xf32>
    %40 = arith.mulf %38, %39 : vector<8x8xf32>
    %c8 = arith.constant 8 : index
    %c0_23 = arith.constant 0 : index
    %41 = vector.load %arg15[%c8, %c0_23] : memref<48x8xf32, #tpu.memory_space<vmem>>, vector<8x8xf32>
    tpu.vector_store %arg15[%c8, %c0_23], %28 {strides = array<i32>} : memref<48x8xf32, #tpu.memory_space<vmem>>, vector<8x8xf32>,
    %c16 = arith.constant 16 : index
    %c0_24 = arith.constant 0 : index
    %42 = vector.load %arg15[%c16, %c0_24] : memref<48x8xf32, #tpu.memory_space<vmem>>, vector<16x8xf32>
    tpu.vector_store %arg15[%c16, %c0_24], %14 {strides = array<i32>} : memref<48x8xf32, #tpu.memory_space<vmem>>, vector<16x8xf32>,
    %c32 = arith.constant 32 : index
    %c0_25 = arith.constant 0 : index
    %43 = vector.load %arg15[%c32, %c0_25] : memref<48x8xf32, #tpu.memory_space<vmem>>, vector<8x8xf32>
    tpu.vector_store %arg15[%c32, %c0_25], %40 {strides = array<i32>} : memref<48x8xf32, #tpu.memory_space<vmem>>, vector<8x8xf32>,
    %44 = tpu.iota {dimensions = array<i32: 0>} : vector<16x1xi32>
    %c8_i32 = arith.constant 8 : i32
    %c0_i32_26 = arith.constant 0 : i32
    %45 = arith.cmpi eq, %c8_i32, %c0_i32_26 : i32
    %c1_i32 = arith.constant 1 : i32
    %46 = arith.select %45, %c1_i32, %c8_i32 : i32
    %47 = vector.broadcast %46 : i32 to vector<16x1xi32>
    %48 = arith.remsi %44, %47 : vector<16x1xi32>
    %c0_i32_27 = arith.constant 0 : i32
    %49 = vector.broadcast %c0_i32_27 : i32 to vector<16x1xi32>
    %50 = arith.cmpi ne, %48, %49 : vector<16x1xi32>
    %c0_i32_28 = arith.constant 0 : i32
    %51 = vector.broadcast %c0_i32_28 : i32 to vector<16x1xi32>
    %52 = arith.cmpi slt, %48, %51 : vector<16x1xi32>
    %c0_i32_29 = arith.constant 0 : i32
    %53 = arith.cmpi slt, %46, %c0_i32_29 : i32
    %54 = vector.broadcast %53 : i1 to vector<16x1xi1>
    %55 = vector.broadcast %54 : vector<16x1xi1> to vector<16x1xi1>
    %56 = arith.xori %52, %55 : vector<16x1xi1>
    %57 = arith.andi %56, %50 : vector<16x1xi1>
    %58 = vector.broadcast %46 : i32 to vector<16x1xi32>
    %59 = arith.addi %48, %58 : vector<16x1xi32>
    %60 = arith.select %57, %59, %48 : vector<16x1xi1>, vector<16x1xi32>
    %c1_i32_30 = arith.constant 1 : i32
    %61 = vector.broadcast %c1_i32_30 : i32 to vector<16x1xi32>
    %62 = arith.cmpi sge, %60, %61 : vector<16x1xi32>
    %c7_i32 = arith.constant 7 : i32
    %63 = vector.broadcast %c7_i32 : i32 to vector<16x1xi32>
    %64 = arith.cmpi slt, %60, %63 : vector<16x1xi32>
    %c7 = arith.constant 7 : index
    %c0_31 = arith.constant 0 : index
    %65 = vector.load %arg15[%c7, %c0_31] : memref<48x8xf32, #tpu.memory_space<vmem>>, vector<16x8xf32>
    %cst_32 = arith.constant 0.000000e+00 : f32
    %66 = vector.shape_cast %62 : vector<16x1xi1> to vector<16x1xi1>
    %67 = vector.broadcast %66 : vector<16x1xi1> to vector<16x8xi1>
    %68 = vector.broadcast %cst_32 : f32 to vector<16x8xf32>
    %69 = arith.select %67, %65, %68 : vector<16x8xi1>, vector<16x8xf32>
    %70 = arith.truncf %69 : vector<16x8xf32> to vector<16x8xbf16>
    %c0_33 = arith.constant 0 : index
    %c0_34 = arith.constant 0 : index
    %71 = vector.load %arg16[%c0_33, %c0_34] : memref<16x72xbf16, #tpu.memory_space<vmem>>, vector<16x8xbf16>
    tpu.vector_store %arg16[%c0_33, %c0_34], %70 {strides = array<i32>} : memref<16x72xbf16, #tpu.memory_space<vmem>>, vector<16x8xbf16>,
    %c8_35 = arith.constant 8 : index
    %c0_36 = arith.constant 0 : index
    %72 = vector.load %arg15[%c8_35, %c0_36] : memref<48x8xf32, #tpu.memory_space<vmem>>, vector<16x8xf32>
    %73 = arith.truncf %72 : vector<16x8xf32> to vector<16x8xbf16>
    %c0_37 = arith.constant 0 : index
    %c8_38 = arith.constant 8 : index
    %74 = vector.load %arg16[%c0_37, %c8_38] : memref<16x72xbf16, #tpu.memory_space<vmem>>, vector<16x8xbf16>
    tpu.vector_store %arg16[%c0_37, %c8_38], %73 {strides = array<i32>} : memref<16x72xbf16, #tpu.memory_space<vmem>>, vector<16x8xbf16>,
    %c9 = arith.constant 9 : index
    %c0_39 = arith.constant 0 : index
    %75 = vector.load %arg15[%c9, %c0_39] : memref<48x8xf32, #tpu.memory_space<vmem>>, vector<16x8xf32>
    %cst_40 = arith.constant 0.000000e+00 : f32
    %76 = vector.shape_cast %64 : vector<16x1xi1> to vector<16x1xi1>
    %77 = vector.broadcast %76 : vector<16x1xi1> to vector<16x8xi1>
    %78 = vector.broadcast %cst_40 : f32 to vector<16x8xf32>
    %79 = arith.select %77, %75, %78 : vector<16x8xi1>, vector<16x8xf32>
    %80 = arith.truncf %79 : vector<16x8xf32> to vector<16x8xbf16>
    %c0_41 = arith.constant 0 : index
    %c16_42 = arith.constant 16 : index
    %81 = vector.load %arg16[%c0_41, %c16_42] : memref<16x72xbf16, #tpu.memory_space<vmem>>, vector<16x8xbf16>
    tpu.vector_store %arg16[%c0_41, %c16_42], %80 {strides = array<i32>} : memref<16x72xbf16, #tpu.memory_space<vmem>>, vector<16x8xbf16>,
    %c15 = arith.constant 15 : index
    %c0_43 = arith.constant 0 : index
    %82 = vector.load %arg15[%c15, %c0_43] : memref<48x8xf32, #tpu.memory_space<vmem>>, vector<16x8xf32>
    %cst_44 = arith.constant 0.000000e+00 : f32
    %83 = vector.shape_cast %62 : vector<16x1xi1> to vector<16x1xi1>
    %84 = vector.broadcast %83 : vector<16x1xi1> to vector<16x8xi1>
    %85 = vector.broadcast %cst_44 : f32 to vector<16x8xf32>
    %86 = arith.select %84, %82, %85 : vector<16x8xi1>, vector<16x8xf32>
    %87 = arith.truncf %86 : vector<16x8xf32> to vector<16x8xbf16>
    %c0_45 = arith.constant 0 : index
    %c24 = arith.constant 24 : index
    %88 = vector.load %arg16[%c0_45, %c24] : memref<16x72xbf16, #tpu.memory_space<vmem>>, vector<16x8xbf16>
    tpu.vector_store %arg16[%c0_45, %c24], %87 {strides = array<i32>} : memref<16x72xbf16, #tpu.memory_space<vmem>>, vector<16x8xbf16>,
    %c16_46 = arith.constant 16 : index
    %c0_47 = arith.constant 0 : index
    %89 = vector.load %arg15[%c16_46, %c0_47] : memref<48x8xf32, #tpu.memory_space<vmem>>, vector<16x8xf32>
    %90 = arith.truncf %89 : vector<16x8xf32> to vector<16x8xbf16>
    %c0_48 = arith.constant 0 : index
    %c32_49 = arith.constant 32 : index
    %91 = vector.load %arg16[%c0_48, %c32_49] : memref<16x72xbf16, #tpu.memory_space<vmem>>, vector<16x8xbf16>
    tpu.vector_store %arg16[%c0_48, %c32_49], %90 {strides = array<i32>} : memref<16x72xbf16, #tpu.memory_space<vmem>>, vector<16x8xbf16>,
    %c17 = arith.constant 17 : index
    %c0_50 = arith.constant 0 : index
    %92 = vector.load %arg15[%c17, %c0_50] : memref<48x8xf32, #tpu.memory_space<vmem>>, vector<16x8xf32>
    %cst_51 = arith.constant 0.000000e+00 : f32
    %93 = vector.shape_cast %64 : vector<16x1xi1> to vector<16x1xi1>
    %94 = vector.broadcast %93 : vector<16x1xi1> to vector<16x8xi1>
    %95 = vector.broadcast %cst_51 : f32 to vector<16x8xf32>
    %96 = arith.select %94, %92, %95 : vector<16x8xi1>, vector<16x8xf32>
    %97 = arith.truncf %96 : vector<16x8xf32> to vector<16x8xbf16>
    %c0_52 = arith.constant 0 : index
    %c40 = arith.constant 40 : index
    %98 = vector.load %arg16[%c0_52, %c40] : memref<16x72xbf16, #tpu.memory_space<vmem>>, vector<16x8xbf16>
    tpu.vector_store %arg16[%c0_52, %c40], %97 {strides = array<i32>} : memref<16x72xbf16, #tpu.memory_space<vmem>>, vector<16x8xbf16>,
    %c23 = arith.constant 23 : index
    %c0_53 = arith.constant 0 : index
    %99 = vector.load %arg15[%c23, %c0_53] : memref<48x8xf32, #tpu.memory_space<vmem>>, vector<16x8xf32>
    %cst_54 = arith.constant 0.000000e+00 : f32
    %100 = vector.shape_cast %62 : vector<16x1xi1> to vector<16x1xi1>
    %101 = vector.broadcast %100 : vector<16x1xi1> to vector<16x8xi1>
    %102 = vector.broadcast %cst_54 : f32 to vector<16x8xf32>
    %103 = arith.select %101, %99, %102 : vector<16x8xi1>, vector<16x8xf32>
    %104 = arith.truncf %103 : vector<16x8xf32> to vector<16x8xbf16>
    %c0_55 = arith.constant 0 : index
    %c48 = arith.constant 48 : index
    %105 = vector.load %arg16[%c0_55, %c48] : memref<16x72xbf16, #tpu.memory_space<vmem>>, vector<16x8xbf16>
    tpu.vector_store %arg16[%c0_55, %c48], %104 {strides = array<i32>} : memref<16x72xbf16, #tpu.memory_space<vmem>>, vector<16x8xbf16>,
    %c24_56 = arith.constant 24 : index
    %c0_57 = arith.constant 0 : index
    %106 = vector.load %arg15[%c24_56, %c0_57] : memref<48x8xf32, #tpu.memory_space<vmem>>, vector<16x8xf32>
    %107 = arith.truncf %106 : vector<16x8xf32> to vector<16x8xbf16>
    %c0_58 = arith.constant 0 : index
    %c56 = arith.constant 56 : index
    %108 = vector.load %arg16[%c0_58, %c56] : memref<16x72xbf16, #tpu.memory_space<vmem>>, vector<16x8xbf16>
    tpu.vector_store %arg16[%c0_58, %c56], %107 {strides = array<i32>} : memref<16x72xbf16, #tpu.memory_space<vmem>>, vector<16x8xbf16>,
    %c25 = arith.constant 25 : index
    %c0_59 = arith.constant 0 : index
    %109 = vector.load %arg15[%c25, %c0_59] : memref<48x8xf32, #tpu.memory_space<vmem>>, vector<16x8xf32>
    %cst_60 = arith.constant 0.000000e+00 : f32
    %110 = vector.shape_cast %64 : vector<16x1xi1> to vector<16x1xi1>
    %111 = vector.broadcast %110 : vector<16x1xi1> to vector<16x8xi1>
    %112 = vector.broadcast %cst_60 : f32 to vector<16x8xf32>
    %113 = arith.select %111, %109, %112 : vector<16x8xi1>, vector<16x8xf32>
    %114 = arith.truncf %113 : vector<16x8xf32> to vector<16x8xbf16>
    %c0_61 = arith.constant 0 : index
    %c64 = arith.constant 64 : index
    %115 = vector.load %arg16[%c0_61, %c64] : memref<16x72xbf16, #tpu.memory_space<vmem>>, vector<16x8xbf16>
    tpu.vector_store %arg16[%c0_61, %c64], %114 {strides = array<i32>} : memref<16x72xbf16, #tpu.memory_space<vmem>>, vector<16x8xbf16>,
    %c0_62 = arith.constant 0 : index
    %c0_63 = arith.constant 0 : index
    %116 = vector.load %arg16[%c0_62, %c0_63] : memref<16x72xbf16, #tpu.memory_space<vmem>>, vector<16x72xbf16>
    %c0_64 = arith.constant 0 : index
    %c0_65 = arith.constant 0 : index
    %117 = vector.load %arg8[%c0_64, %c0_65] : memref<72x8xbf16, #tpu.memory_space<vmem>>, vector<72x8xbf16>
    %cst_66 = arith.constant dense<0.000000e+00> : vector<16x8xf32>
    %118 = tpu.matmul %116, %117, %cst_66 {dimension_numbers = #tpu.dot_dimension_numbers<[1], [0], [0], [1], [0, 0, 1, 1], [], []>} : vector<16x72xbf16>, vector<72x8xbf16>, vector<16x8xf32> -> vector<16x8xf32>
    %c0_67 = arith.constant 0 : index
    %c0_68 = arith.constant 0 : index
    %119 = vector.load %arg9[%c0_67, %c0_68] : memref<1x8xf32, #tpu.memory_space<vmem>>, vector<1x8xf32>
    %120 = vector.broadcast %119 : vector<1x8xf32> to vector<16x8xf32>
    %121 = arith.mulf %118, %120 : vector<16x8xf32>
    %c0_69 = arith.constant 0 : index
    %c0_70 = arith.constant 0 : index
    %122 = vector.load %arg10[%c0_69, %c0_70] : memref<1x8xf32, #tpu.memory_space<vmem>>, vector<1x8xf32>
    %123 = vector.broadcast %122 : vector<1x8xf32> to vector<16x8xf32>
    %124 = arith.addf %121, %123 : vector<16x8xf32>
    %cst_71 = arith.constant 0.000000e+00 : f32
    %125 = vector.broadcast %cst_71 : f32 to vector<16x8xf32>
    %126 = arith.maximumf %124, %125 : vector<16x8xf32>
    %127 = arith.truncf %126 : vector<16x8xf32> to vector<16x8xbf16>
    %c0_72 = arith.constant 0 : index
    %c0_73 = arith.constant 0 : index
    %128 = vector.load %arg11[%c0_72, %c0_73] : memref<8x32xbf16, #tpu.memory_space<vmem>>, vector<8x32xbf16>
    %cst_74 = arith.constant dense<0.000000e+00> : vector<16x32xf32>
    %129 = tpu.matmul %127, %128, %cst_74 {dimension_numbers = #tpu.dot_dimension_numbers<[1], [0], [0], [1], [0, 0, 1, 1], [], []>} : vector<16x8xbf16>, vector<8x32xbf16>, vector<16x32xf32> -> vector<16x32xf32>
    %c0_75 = arith.constant 0 : index
    %c0_76 = arith.constant 0 : index
    %130 = vector.load %arg12[%c0_75, %c0_76] : memref<1x32xf32, #tpu.memory_space<vmem>>, vector<1x32xf32>
    %131 = vector.broadcast %130 : vector<1x32xf32> to vector<16x32xf32>
    %132 = arith.mulf %129, %131 : vector<16x32xf32>
    %c0_77 = arith.constant 0 : index
    %c0_78 = arith.constant 0 : index
    %133 = vector.load %arg13[%c0_77, %c0_78] : memref<1x32xf32, #tpu.memory_space<vmem>>, vector<1x32xf32>
    %134 = vector.broadcast %133 : vector<1x32xf32> to vector<16x32xf32>
    %135 = arith.addf %132, %134 : vector<16x32xf32>
    %136 = arith.addf %135, %3 : vector<16x32xf32>
    %cst_79 = arith.constant 0.000000e+00 : f32
    %137 = vector.broadcast %cst_79 : f32 to vector<16x32xf32>
    %138 = arith.maximumf %136, %137 : vector<16x32xf32>
    %c0_80 = arith.constant 0 : index
    %c0_81 = arith.constant 0 : index
    %c0_82 = arith.constant 0 : index
    %139 = vector.load %arg14[%c0_80, %c0_81, %c0_82] : memref<1x16x32xf32, #tpu.memory_space<vmem>>, vector<1x16x32xf32>
    %140 = vector.shape_cast %139 : vector<1x16x32xf32> to vector<16x32xf32>
    %141 = vector.shape_cast %138 : vector<16x32xf32> to vector<1x16x32xf32>
    tpu.vector_store %arg14[%c0_80, %c0_81, %c0_82], %141 {strides = array<i32>} : memref<1x16x32xf32, #tpu.memory_space<vmem>>, vector<1x16x32xf32>,
    return
  }
  func.func @transform_0(%arg0: i32, %arg1: i32) -> (i32, i32, i32) {
    %c0_i32 = arith.constant 0 : i32
    %c0_i32_0 = arith.constant 0 : i32
    return %arg0, %arg1, %c0_i32 : i32, i32, i32
  }
  func.func @transform_1(%arg0: i32, %arg1: i32) -> (i32, i32, i32) {
    %c2_i32 = arith.constant 2 : i32
    %0 = arith.muli %arg1, %c2_i32 : i32
    %c1_i32 = arith.constant 1 : i32
    %1 = arith.subi %0, %c1_i32 : i32
    %c0_i32 = arith.constant 0 : i32
    %2 = arith.maxsi %1, %c0_i32 : i32
    %c0_i32_0 = arith.constant 0 : i32
    %c0_i32_1 = arith.constant 0 : i32
    return %arg0, %2, %c0_i32_0 : i32, i32, i32
  }
  func.func @transform_2(%arg0: i32, %arg1: i32) -> (i32, i32, i32) {
    %c2_i32 = arith.constant 2 : i32
    %0 = arith.muli %arg1, %c2_i32 : i32
    %c2_i32_0 = arith.constant 2 : i32
    %1 = arith.addi %0, %c2_i32_0 : i32
    %c7_i32 = arith.constant 7 : i32
    %2 = arith.minsi %1, %c7_i32 : i32
    %c0_i32 = arith.constant 0 : i32
    %c0_i32_1 = arith.constant 0 : i32
    return %arg0, %2, %c0_i32 : i32, i32, i32
  }
  func.func @transform_3(%arg0: i32, %arg1: i32) -> (i32, i32) {
    %c0_i32 = arith.constant 0 : i32
    %c0_i32_0 = arith.constant 0 : i32
    %c0_i32_1 = arith.constant 0 : i32
    return %c0_i32, %c0_i32_0 : i32, i32
  }
  func.func @transform_4(%arg0: i32, %arg1: i32) -> (i32, i32) {
    %c0_i32 = arith.constant 0 : i32
    %c0_i32_0 = arith.constant 0 : i32
    %c0_i32_1 = arith.constant 0 : i32
    return %c0_i32, %c0_i32_0 : i32, i32
  }
  func.func @transform_5(%arg0: i32, %arg1: i32) -> (i32, i32) {
    %c0_i32 = arith.constant 0 : i32
    %c0_i32_0 = arith.constant 0 : i32
    %c0_i32_1 = arith.constant 0 : i32
    return %c0_i32, %c0_i32_0 : i32, i32
  }
  func.func @transform_6(%arg0: i32, %arg1: i32) -> (i32, i32) {
    %c0_i32 = arith.constant 0 : i32
    %c0_i32_0 = arith.constant 0 : i32
    %c0_i32_1 = arith.constant 0 : i32
    return %c0_i32, %c0_i32_0 : i32, i32
  }
  func.func @transform_7(%arg0: i32, %arg1: i32) -> (i32, i32) {
    %c0_i32 = arith.constant 0 : i32
    %c0_i32_0 = arith.constant 0 : i32
    %c0_i32_1 = arith.constant 0 : i32
    return %c0_i32, %c0_i32_0 : i32, i32
  }
  func.func @transform_8(%arg0: i32, %arg1: i32) -> (i32, i32) {
    %c0_i32 = arith.constant 0 : i32
    %c0_i32_0 = arith.constant 0 : i32
    %c0_i32_1 = arith.constant 0 : i32
    return %c0_i32, %c0_i32_0 : i32, i32
  }
  func.func @transform_9(%arg0: i32, %arg1: i32) -> (i32, i32) {
    %c0_i32 = arith.constant 0 : i32
    %c0_i32_0 = arith.constant 0 : i32
    %c0_i32_1 = arith.constant 0 : i32
    return %c0_i32, %c0_i32_0 : i32, i32
  }
  func.func @transform_10(%arg0: i32, %arg1: i32) -> (i32, i32) {
    %c0_i32 = arith.constant 0 : i32
    %c0_i32_0 = arith.constant 0 : i32
    %c0_i32_1 = arith.constant 0 : i32
    return %c0_i32, %c0_i32_0 : i32, i32
  }
  func.func @transform_11(%arg0: i32, %arg1: i32) -> (i32, i32) {
    %c0_i32 = arith.constant 0 : i32
    %c0_i32_0 = arith.constant 0 : i32
    %c0_i32_1 = arith.constant 0 : i32
    return %c0_i32, %c0_i32_0 : i32, i32
  }
  func.func @transform_12(%arg0: i32, %arg1: i32) -> (i32, i32, i32) {
    %c0_i32 = arith.constant 0 : i32
    %c0_i32_0 = arith.constant 0 : i32
    return %arg0, %arg1, %c0_i32 : i32, i32, i32
  }
}

</mosaic_0001>

<llo_original>
// kernel: tpu_custom_call.1
$region0: #{tpu_custom_call.1}
  #allocation0 [shape = 'u32[]', space=smem, size = 0x4, offset = 0x4, fixed_abs, tag = 'smem constant byte address 0x4 - core index']
  #allocation1 [shape = 'u32[144,128]{1,0:T(1,128)}', space=vmem, size = 0x12000, scoped, tag = 'internal scratch']
  #allocation2 [shape = 'f32[48,8]{1,0:T(8,128)}', space=vmem, size = 0x6000, scoped, tag = 'scratch operand']
  #allocation3 [shape = 'bf16[16,72]{1,0:T(8,128)(2,1)}', space=vmem, size = 0x1000, scoped, tag = 'scratch operand']
  %s0 = inlined_call_operand.vmem [shape: f32[2,64,32], index: 0, kind: input, shape index: {}]
  %s1 = inlined_call_operand.vmem [shape: f32[2,64,32], index: 1, kind: input, shape index: {}]
  %s2 = inlined_call_operand.vmem [shape: f32[2,64,32], index: 2, kind: input, shape index: {}]
  %s3 = inlined_call_operand.vmem [shape: bf16[32,8], index: 3, kind: input, shape index: {}]
  %s4 = inlined_call_operand.vmem [shape: f32[1,8], index: 4, kind: input, shape index: {}]
  %s5 = inlined_call_operand.vmem [shape: f32[1,8], index: 5, kind: input, shape index: {}]
  %s6 = inlined_call_operand.vmem [shape: bf16[72,8], index: 6, kind: input, shape index: {}]
  %s7 = inlined_call_operand.vmem [shape: f32[1,8], index: 7, kind: input, shape index: {}]
  %s8 = inlined_call_operand.vmem [shape: f32[1,8], index: 8, kind: input, shape index: {}]
  %s9 = inlined_call_operand.vmem [shape: bf16[8,32], index: 9, kind: input, shape index: {}]
  %s10 = inlined_call_operand.vmem [shape: f32[1,32], index: 10, kind: input, shape index: {}]
  %s11 = inlined_call_operand.vmem [shape: f32[1,32], index: 11, kind: input, shape index: {}]
  %s12 = inlined_call_operand.vmem [shape: f32[2,64,32], index: 12, kind: output, shape index: {}]
  %s13 = sld [smem:[#allocation0]]
  $region81: #{tpu_custom_call.1} parent=0
    _
  %s15 = ssub.s32 1, %s13
  %s16 = scalar_select 0, %s15, %s13
  loop: start=0, step=1, limit=10
  $region2: #{tpu_custom_call.1} parent=0 // loop_pre_header
    _
  $region3: #{tpu_custom_call.1} parent=0 // loop_header
    %s18 = sphi 0, %s22
    %p19 = scmp.ge.s32.totalorder %s18, 10
    %s25 = sphi 0, %s37
    %s26 = sphi 0, %s33
    %s27 = sphi 0, %s25
    %s28 = sphi 0, %s26
    %s29 = sphi 0, %s27
    %s30 = sphi 0, %s28
    %s42 = sphi 0, %s44
    %s45 = sphi 0, %s42
    %s46 = sphi 0, %s45
    %s62 = sphi 0, %s46
    %s78 = sphi 0, %s80
    %s81 = sphi 0, %s78
    %s82 = sphi 0, %s81
    %s98 = sphi 0, %s82
    %s114 = sphi 0, %s116
    %s117 = sphi 0, %s114
    %s118 = sphi 0, %s117
    %s134 = sphi 0, %s118
    %s138 = sphi 0, %s138
    %s140 = sphi 0, %s138
    %s141 = sphi 0, %s140
    %s155 = sphi 0, %s141
    %s159 = sphi 0, %s159
    %s161 = sphi 0, %s159
    %s162 = sphi 0, %s161
    %s176 = sphi 0, %s162
    %s180 = sphi 0, %s180
    %s182 = sphi 0, %s180
    %s183 = sphi 0, %s182
    %s197 = sphi 0, %s183
    %s201 = sphi 0, %s201
    %s203 = sphi 0, %s201
    %s204 = sphi 0, %s203
    %s218 = sphi 0, %s204
    %s222 = sphi 0, %s222
    %s224 = sphi 0, %s222
    %s225 = sphi 0, %s224
    %s239 = sphi 0, %s225
    %s243 = sphi 0, %s243
    %s245 = sphi 0, %s243
    %s246 = sphi 0, %s245
    %s260 = sphi 0, %s246
    %s264 = sphi 0, %s264
    %s266 = sphi 0, %s264
    %s267 = sphi 0, %s266
    %s281 = sphi 0, %s267
    %s285 = sphi 0, %s285
    %s287 = sphi 0, %s285
    %s288 = sphi 0, %s287
    %s302 = sphi 0, %s288
    %s306 = sphi 0, %s306
    %s308 = sphi 0, %s306
    %s309 = sphi 0, %s308
    %s323 = sphi 0, %s309
    %s331 = sphi 0, %s333
    %s334 = sphi 0, %s331
    %s335 = sphi 0, %s334
    %s351 = sphi 0, %s335
  $region4: #{tpu_custom_call.1} parent=0 // loop_header_branch
    %21 = sbr.rel (%p19) target = $region8
  $region5: #{tpu_custom_call.1} parent=0 // loop_body
    %s23 = ssub.s32 %s18, 1
    %s24 = ssub.s32 %s18, 2
    %s31 = sadd.s32 1, %s26
    %p32 = scmp.ge.s32.totalorder %s31, 4
    %s33 = scalar_select %p32, 0, %s31
    %s34 = sadd.s32 1, %s25
    %s35 = scalar_select %p32, %s34, %s25
    %p36 = scmp.ge.s32.totalorder %s35, 2
    %s37 = scalar_select %p36, 0, %s35
    %s38 = ssub.s32 %s25, %s37
    %s39 = ssub.s32 %s26, %s33
    %s40 = sor.u32 %s38, %s39
    %p41 = scmp.eq.s32.totalorder %s40, 0
    %s43 = sadd.s32 %s42, 1
    %s44 = scalar_select %p41, %s42, %s43
    %p47 = pneg %p41
    %p48 = scmp.eq.s32.totalorder %s18, 7
    %p49 = por %p47, %p48
    %p50 = scmp.ne.s32.totalorder %s42, %s45
    %p51 = scmp.eq.s32.totalorder %s18, 0
    %p52 = por %p50, %p51
    %p53 = scmp.ne.s32.totalorder %s42, %s45
    %p54 = scmp.eq.s32.totalorder %s23, 7
    %p55 = por %p53, %p54
    %p56 = scmp.ne.s32.totalorder %s45, %s46
    %p57 = scmp.eq.s32.totalorder %s23, 0
    %p58 = por %p56, %p57
    %p59 = scmp.ne.s32.totalorder %s45, %s46
    %p60 = scmp.eq.s32.totalorder %s24, 7
    %p61 = por %p59, %p60
    %p63 = scmp.ne.s32.totalorder %s46, %s62
    %p64 = scmp.eq.s32.totalorder %s24, 0
    %p65 = por %p63, %p64
    %s66 = smul.u32 %s26, 2
    %s67 = ssub.s32 %s66, 1
    %p68 = scmp.gt.s32.totalorder %s67, 0
    %s69 = scalar_select %p68, %s67, 0
    %s70 = smul.u32 %s33, 2
    %s71 = ssub.s32 %s70, 1
    %p72 = scmp.gt.s32.totalorder %s71, 0
    %s73 = scalar_select %p72, %s71, 0
    %s74 = ssub.s32 %s25, %s37
    %s75 = ssub.s32 %s69, %s73
    %s76 = sor.u32 %s74, %s75
    %p77 = scmp.eq.s32.totalorder %s76, 0
    %s79 = sadd.s32 %s78, 1
    %s80 = scalar_select %p77, %s78, %s79
    %p83 = pneg %p77
    %p84 = scmp.eq.s32.totalorder %s18, 7
    %p85 = por %p83, %p84
    %p86 = scmp.ne.s32.totalorder %s78, %s81
    %p87 = scmp.eq.s32.totalorder %s18, 0
    %p88 = por %p86, %p87
    %p89 = scmp.ne.s32.totalorder %s78, %s81
    %p90 = scmp.eq.s32.totalorder %s23, 7
    %p91 = por %p89, %p90
    %p92 = scmp.ne.s32.totalorder %s81, %s82
    %p93 = scmp.eq.s32.totalorder %s23, 0
    %p94 = por %p92, %p93
    %p95 = scmp.ne.s32.totalorder %s81, %s82
    %p96 = scmp.eq.s32.totalorder %s24, 7
    %p97 = por %p95, %p96
    %p99 = scmp.ne.s32.totalorder %s82, %s98
    %p100 = scmp.eq.s32.totalorder %s24, 0
    %p101 = por %p99, %p100
    %s102 = smul.u32 %s26, 2
    %s103 = sadd.s32 %s102, 2
    %p104 = scmp.lt.s32.totalorder %s103, 7
    %s105 = scalar_select %p104, %s103, 7
    %s106 = smul.u32 %s33, 2
    %s107 = sadd.s32 %s106, 2
    %p108 = scmp.lt.s32.totalorder %s107, 7
    %s109 = scalar_select %p108, %s107, 7
    %s110 = ssub.s32 %s25, %s37
    %s111 = ssub.s32 %s105, %s109
    %s112 = sor.u32 %s110, %s111
    %p113 = scmp.eq.s32.totalorder %s112, 0
    %s115 = sadd.s32 %s114, 1
    %s116 = scalar_select %p113, %s114, %s115
    %p119 = pneg %p113
    %p120 = scmp.eq.s32.totalorder %s18, 7
    %p121 = por %p119, %p120
    %p122 = scmp.ne.s32.totalorder %s114, %s117
    %p123 = scmp.eq.s32.totalorder %s18, 0
    %p124 = por %p122, %p123
    %p125 = scmp.ne.s32.totalorder %s114, %s117
    %p126 = scmp.eq.s32.totalorder %s23, 7
    %p127 = por %p125, %p126
    %p128 = scmp.ne.s32.totalorder %s117, %s118
    %p129 = scmp.eq.s32.totalorder %s23, 0
    %p130 = por %p128, %p129
    %p131 = scmp.ne.s32.totalorder %s117, %s118
    %p132 = scmp.eq.s32.totalorder %s24, 7
    %p133 = por %p131, %p132
    %p135 = scmp.ne.s32.totalorder %s118, %s134
    %p136 = scmp.eq.s32.totalorder %s24, 0
    %p137 = por %p135, %p136
    %s139 = sadd.s32 %s138, 1
    %p142 = scmp.eq.s32.totalorder %s18, 7
    %p143 = scmp.ne.s32.totalorder %s138, %s140
    %p144 = scmp.eq.s32.totalorder %s18, 0
    %p145 = por %p143, %p144
    %p146 = scmp.ne.s32.totalorder %s138, %s140
    %p147 = scmp.eq.s32.totalorder %s23, 7
    %p148 = por %p146, %p147
    %p149 = scmp.ne.s32.totalorder %s140, %s141
    %p150 = scmp.eq.s32.totalorder %s23, 0
    %p151 = por %p149, %p150
    %p152 = scmp.ne.s32.totalorder %s140, %s141
    %p153 = scmp.eq.s32.totalorder %s24, 7
    %p154 = por %p152, %p153
    %p156 = scmp.ne.s32.totalorder %s141, %s155
    %p157 = scmp.eq.s32.totalorder %s24, 0
    %p158 = por %p156, %p157
    %s160 = sadd.s32 %s159, 1
    %p163 = scmp.eq.s32.totalorder %s18, 7
    %p164 = scmp.ne.s32.totalorder %s159, %s161
    %p165 = scmp.eq.s32.totalorder %s18, 0
    %p166 = por %p164, %p165
    %p167 = scmp.ne.s32.totalorder %s159, %s161
    %p168 = scmp.eq.s32.totalorder %s23, 7
    %p169 = por %p167, %p168
    %p170 = scmp.ne.s32.totalorder %s161, %s162
    %p171 = scmp.eq.s32.totalorder %s23, 0
    %p172 = por %p170, %p171
    %p173 = scmp.ne.s32.totalorder %s161, %s162
    %p174 = scmp.eq.s32.totalorder %s24, 7
    %p175 = por %p173, %p174
    %p177 = scmp.ne.s32.totalorder %s162, %s176
    %p178 = scmp.eq.s32.totalorder %s24, 0
    %p179 = por %p177, %p178
    %s181 = sadd.s32 %s180, 1
    %p184 = scmp.eq.s32.totalorder %s18, 7
    %p185 = scmp.ne.s32.totalorder %s180, %s182
    %p186 = scmp.eq.s32.totalorder %s18, 0
    %p187 = por %p185, %p186
    %p188 = scmp.ne.s32.totalorder %s180, %s182
    %p189 = scmp.eq.s32.totalorder %s23, 7
    %p190 = por %p188, %p189
    %p191 = scmp.ne.s32.totalorder %s182, %s183
    %p192 = scmp.eq.s32.totalorder %s23, 0
    %p193 = por %p191, %p192
    %p194 = scmp.ne.s32.totalorder %s182, %s183
    %p195 = scmp.eq.s32.totalorder %s24, 7
    %p196 = por %p194, %p195
    %p198 = scmp.ne.s32.totalorder %s183, %s197
    %p199 = scmp.eq.s32.totalorder %s24, 0
    %p200 = por %p198, %p199
    %s202 = sadd.s32 %s201, 1
    %p205 = scmp.eq.s32.totalorder %s18, 7
    %p206 = scmp.ne.s32.totalorder %s201, %s203
    %p207 = scmp.eq.s32.totalorder %s18, 0
    %p208 = por %p206, %p207
    %p209 = scmp.ne.s32.totalorder %s201, %s203
    %p210 = scmp.eq.s32.totalorder %s23, 7
    %p211 = por %p209, %p210
    %p212 = scmp.ne.s32.totalorder %s203, %s204
    %p213 = scmp.eq.s32.totalorder %s23, 0
    %p214 = por %p212, %p213
    %p215 = scmp.ne.s32.totalorder %s203, %s204
    %p216 = scmp.eq.s32.totalorder %s24, 7
    %p217 = por %p215, %p216
    %p219 = scmp.ne.s32.totalorder %s204, %s218
    %p220 = scmp.eq.s32.totalorder %s24, 0
    %p221 = por %p219, %p220
    %s223 = sadd.s32 %s222, 1
    %p226 = scmp.eq.s32.totalorder %s18, 7
    %p227 = scmp.ne.s32.totalorder %s222, %s224
    %p228 = scmp.eq.s32.totalorder %s18, 0
    %p229 = por %p227, %p228
    %p230 = scmp.ne.s32.totalorder %s222, %s224
    %p231 = scmp.eq.s32.totalorder %s23, 7
    %p232 = por %p230, %p231
    %p233 = scmp.ne.s32.totalorder %s224, %s225
    %p234 = scmp.eq.s32.totalorder %s23, 0
    %p235 = por %p233, %p234
    %p236 = scmp.ne.s32.totalorder %s224, %s225
    %p237 = scmp.eq.s32.totalorder %s24, 7
    %p238 = por %p236, %p237
    %p240 = scmp.ne.s32.totalorder %s225, %s239
    %p241 = scmp.eq.s32.totalorder %s24, 0
    %p242 = por %p240, %p241
    %s244 = sadd.s32 %s243, 1
    %p247 = scmp.eq.s32.totalorder %s18, 7
    %p248 = scmp.ne.s32.totalorder %s243, %s245
    %p249 = scmp.eq.s32.totalorder %s18, 0
    %p250 = por %p248, %p249
    %p251 = scmp.ne.s32.totalorder %s243, %s245
    %p252 = scmp.eq.s32.totalorder %s23, 7
    %p253 = por %p251, %p252
    %p254 = scmp.ne.s32.totalorder %s245, %s246
    %p255 = scmp.eq.s32.totalorder %s23, 0
    %p256 = por %p254, %p255
    %p257 = scmp.ne.s32.totalorder %s245, %s246
    %p258 = scmp.eq.s32.totalorder %s24, 7
    %p259 = por %p257, %p258
    %p261 = scmp.ne.s32.totalorder %s246, %s260
    %p262 = scmp.eq.s32.totalorder %s24, 0
    %p263 = por %p261, %p262
    %s265 = sadd.s32 %s264, 1
    %p268 = scmp.eq.s32.totalorder %s18, 7
    %p269 = scmp.ne.s32.totalorder %s264, %s266
    %p270 = scmp.eq.s32.totalorder %s18, 0
    %p271 = por %p269, %p270
    %p272 = scmp.ne.s32.totalorder %s264, %s266
    %p273 = scmp.eq.s32.totalorder %s23, 7
    %p274 = por %p272, %p273
    %p275 = scmp.ne.s32.totalorder %s266, %s267
    %p276 = scmp.eq.s32.totalorder %s23, 0
    %p277 = por %p275, %p276
    %p278 = scmp.ne.s32.totalorder %s266, %s267
    %p279 = scmp.eq.s32.totalorder %s24, 7
    %p280 = por %p278, %p279
    %p282 = scmp.ne.s32.totalorder %s267, %s281
    %p283 = scmp.eq.s32.totalorder %s24, 0
    %p284 = por %p282, %p283
    %s286 = sadd.s32 %s285, 1
    %p289 = scmp.eq.s32.totalorder %s18, 7
    %p290 = scmp.ne.s32.totalorder %s285, %s287
    %p291 = scmp.eq.s32.totalorder %s18, 0
    %p292 = por %p290, %p291
    %p293 = scmp.ne.s32.totalorder %s285, %s287
    %p294 = scmp.eq.s32.totalorder %s23, 7
    %p295 = por %p293, %p294
    %p296 = scmp.ne.s32.totalorder %s287, %s288
    %p297 = scmp.eq.s32.totalorder %s23, 0
    %p298 = por %p296, %p297
    %p299 = scmp.ne.s32.totalorder %s287, %s288
    %p300 = scmp.eq.s32.totalorder %s24, 7
    %p301 = por %p299, %p300
    %p303 = scmp.ne.s32.totalorder %s288, %s302
    %p304 = scmp.eq.s32.totalorder %s24, 0
    %p305 = por %p303, %p304
    %s307 = sadd.s32 %s306, 1
    %p310 = scmp.eq.s32.totalorder %s18, 7
    %p311 = scmp.ne.s32.totalorder %s306, %s308
    %p312 = scmp.eq.s32.totalorder %s18, 0
    %p313 = por %p311, %p312
    %p314 = scmp.ne.s32.totalorder %s306, %s308
    %p315 = scmp.eq.s32.totalorder %s23, 7
    %p316 = por %p314, %p315
    %p317 = scmp.ne.s32.totalorder %s308, %s309
    %p318 = scmp.eq.s32.totalorder %s23, 0
    %p319 = por %p317, %p318
    %p320 = scmp.ne.s32.totalorder %s308, %s309
    %p321 = scmp.eq.s32.totalorder %s24, 7
    %p322 = por %p320, %p321
    %p324 = scmp.ne.s32.totalorder %s309, %s323
    %p325 = scmp.eq.s32.totalorder %s24, 0
    %p326 = por %p324, %p325
    %s327 = ssub.s32 %s25, %s37
    %s328 = ssub.s32 %s26, %s33
    %s329 = sor.u32 %s327, %s328
    %p330 = scmp.eq.s32.totalorder %s329, 0
    %s332 = sadd.s32 %s331, 1
    %s333 = scalar_select %p330, %s331, %s332
    %p336 = pneg %p330
    %p337 = scmp.eq.s32.totalorder %s18, 7
    %p338 = por %p336, %p337
    %p339 = scmp.ne.s32.totalorder %s331, %s334
    %p340 = scmp.eq.s32.totalorder %s18, 0
    %p341 = por %p339, %p340
    %p342 = scmp.ne.s32.totalorder %s331, %s334
    %p343 = scmp.eq.s32.totalorder %s23, 7
    %p344 = por %p342, %p343
    %p345 = scmp.ne.s32.totalorder %s334, %s335
    %p346 = scmp.eq.s32.totalorder %s23, 0
    %p347 = por %p345, %p346
    %p348 = scmp.ne.s32.totalorder %s334, %s335
    %p349 = scmp.eq.s32.totalorder %s24, 7
    %p350 = por %p348, %p349
    %p352 = scmp.ne.s32.totalorder %s335, %s351
    %p353 = scmp.eq.s32.totalorder %s24, 0
    %p354 = por %p352, %p353
    %p355 = scmp.le.s32.totalorder 1, %s18
    %p356 = scmp.lt.s32.totalorder %s18, 9
    %p357 = pnand %p355, %p356
    %p358 = pneg %p357
    // Predicated region
    $region9: #{tpu_custom_call.1} parent=5 // pred_check
      _
    $region10: #{tpu_custom_call.1} parent=5 // pred_check_branch
      %360 = sbr.rel (%p357) target = $region12
    $region11: #{tpu_custom_call.1} parent=5 // pred_region
      %s361 = ssub.s32 %s18, 1
      // Predicated region
      $region13: #{tpu_custom_call.1} parent=11 // pred_check
        %p362 = pneg %p151
      $region14: #{tpu_custom_call.1} parent=11 // pred_check_branch
        %364 = sbr.rel (%p362) target = $region16
      $region15: #{tpu_custom_call.1} parent=11 // pred_region
        _
      $region16: #{tpu_custom_call.1} parent=11 // pred_fallthru
        _
      // Predicated region
      $region17: #{tpu_custom_call.1} parent=11 // pred_check
        %p365 = pneg %p172
      $region18: #{tpu_custom_call.1} parent=11 // pred_check_branch
        %367 = sbr.rel (%p365) target = $region20
      $region19: #{tpu_custom_call.1} parent=11 // pred_region
        _
      $region20: #{tpu_custom_call.1} parent=11 // pred_fallthru
        _
      // Predicated region
      $region21: #{tpu_custom_call.1} parent=11 // pred_check
        %p368 = pneg %p193
      $region22: #{tpu_custom_call.1} parent=11 // pred_check_branch
        %370 = sbr.rel (%p368) target = $region24
      $region23: #{tpu_custom_call.1} parent=11 // pred_region
        _
      $region24: #{tpu_custom_call.1} parent=11 // pred_fallthru
        _
      // Predicated region
      $region25: #{tpu_custom_call.1} parent=11 // pred_check
        %p371 = pneg %p214
      $region26: #{tpu_custom_call.1} parent=11 // pred_check_branch
        %373 = sbr.rel (%p371) target = $region28
      $region27: #{tpu_custom_call.1} parent=11 // pred_region
        _
      $region28: #{tpu_custom_call.1} parent=11 // pred_fallthru
        _
      // Predicated region
      $region29: #{tpu_custom_call.1} parent=11 // pred_check
        %p374 = pneg %p235
      $region30: #{tpu_custom_call.1} parent=11 // pred_check_branch
        %376 = sbr.rel (%p374) target = $region32
      $region31: #{tpu_custom_call.1} parent=11 // pred_region
        _
      $region32: #{tpu_custom_call.1} parent=11 // pred_fallthru
        _
      // Predicated region
      $region33: #{tpu_custom_call.1} parent=11 // pred_check
        %p377 = pneg %p256
      $region34: #{tpu_custom_call.1} parent=11 // pred_check_branch
        %379 = sbr.rel (%p377) target = $region36
      $region35: #{tpu_custom_call.1} parent=11 // pred_region
        _
      $region36: #{tpu_custom_call.1} parent=11 // pred_fallthru
        _
      // Predicated region
      $region37: #{tpu_custom_call.1} parent=11 // pred_check
        %p380 = pneg %p277
      $region38: #{tpu_custom_call.1} parent=11 // pred_check_branch
        %382 = sbr.rel (%p380) target = $region40
      $region39: #{tpu_custom_call.1} parent=11 // pred_region
        _
      $region40: #{tpu_custom_call.1} parent=11 // pred_fallthru
        _
      // Predicated region
      $region41: #{tpu_custom_call.1} parent=11 // pred_check
        %p383 = pneg %p298
      $region42: #{tpu_custom_call.1} parent=11 // pred_check_branch
        %385 = sbr.rel (%p383) target = $region44
      $region43: #{tpu_custom_call.1} parent=11 // pred_region
        _
      $region44: #{tpu_custom_call.1} parent=11 // pred_fallthru
        _
      // Predicated region
      $region45: #{tpu_custom_call.1} parent=11 // pred_check
        %p386 = pneg %p319
      $region46: #{tpu_custom_call.1} parent=11 // pred_check_branch
        %388 = sbr.rel (%p386) target = $region48
      $region47: #{tpu_custom_call.1} parent=11 // pred_region
        _
      $region48: #{tpu_custom_call.1} parent=11 // pred_fallthru
        _
    $region12: #{tpu_custom_call.1} parent=5 // pred_fallthru
      _
    %p389 = scmp.lt.s32.totalorder %s18, 8
    // Predicated region
    $region49: #{tpu_custom_call.1} parent=5 // pred_check
      %p390 = pneg %p389
    $region50: #{tpu_custom_call.1} parent=5 // pred_check_branch
      %392 = sbr.rel (%p390) target = $region52
    $region51: #{tpu_custom_call.1} parent=5 // pred_region
      // Predicated region
      $region53: #{tpu_custom_call.1} parent=51 // pred_check
        %p393 = pneg %p52
      $region54: #{tpu_custom_call.1} parent=51 // pred_check_branch
        %395 = sbr.rel (%p393) target = $region56
      $region55: #{tpu_custom_call.1} parent=51 // pred_region
        %s396 = smul.u32 2, %s26
        %p397 = scmp.lt.s32.totalorder %s25, 1
        %s398 = scalar_select %p397, %s25, 1
        %p399 = scmp.lt.s32.totalorder %s396, 7
        %s400 = scalar_select %p399, %s396, 7
        %s401 = smul.addr %s398, 8
        %s402 = sadd.s32 %s400, %s401
        %s403 = smul.addr %s402, 8
        %s404 = scalar_lea.vmem %s0, %s403
        %s405 = smul.u32 2, %s26
      $region56: #{tpu_custom_call.1} parent=51 // pred_fallthru
        _
      // Predicated region
      $region57: #{tpu_custom_call.1} parent=51 // pred_check
        %p406 = pneg %p88
      $region58: #{tpu_custom_call.1} parent=51 // pred_check_branch
        %408 = sbr.rel (%p406) target = $region60
      $region59: #{tpu_custom_call.1} parent=51 // pred_region
        %s409 = smul.u32 %s26, 2
        %s410 = ssub.s32 %s409, 1
        %p411 = scmp.gt.s32.totalorder %s410, 0
        %s412 = scalar_select %p411, %s410, 0
        %p413 = scmp.lt.s32.totalorder %s25, 1
        %s414 = scalar_select %p413, %s25, 1
        %p415 = scmp.lt.s32.totalorder %s412, 7
        %s416 = scalar_select %p415, %s412, 7
        %s417 = smul.addr %s414, 8
        %s418 = sadd.s32 %s416, %s417
        %s419 = smul.addr %s418, 8
        %s420 = scalar_lea.vmem %s1, %s419
        %s421 = smul.u32 %s26, 2
        %s422 = ssub.s32 %s421, 1
        %p423 = scmp.gt.s32.totalorder %s422, 0
        %s424 = scalar_select %p423, %s422, 0
      $region60: #{tpu_custom_call.1} parent=51 // pred_fallthru
        _
      // Predicated region
      $region61: #{tpu_custom_call.1} parent=51 // pred_check
        %p425 = pneg %p124
      $region62: #{tpu_custom_call.1} parent=51 // pred_check_branch
        %427 = sbr.rel (%p425) target = $region64
      $region63: #{tpu_custom_call.1} parent=51 // pred_region
        %s428 = smul.u32 %s26, 2
        %s429 = sadd.s32 %s428, 2
        %p430 = scmp.lt.s32.totalorder %s429, 7
        %s431 = scalar_select %p430, %s429, 7
        %p432 = scmp.lt.s32.totalorder %s25, 1
        %s433 = scalar_select %p432, %s25, 1
        %p434 = scmp.lt.s32.totalorder %s431, 7
        %s435 = scalar_select %p434, %s431, 7
        %s436 = smul.addr %s433, 8
        %s437 = sadd.s32 %s435, %s436
        %s438 = smul.addr %s437, 8
        %s439 = scalar_lea.vmem %s2, %s438
        %s440 = smul.u32 %s26, 2
        %s441 = sadd.s32 %s440, 2
        %p442 = scmp.lt.s32.totalorder %s441, 7
        %s443 = scalar_select %p442, %s441, 7
      $region64: #{tpu_custom_call.1} parent=51 // pred_fallthru
        _
    $region52: #{tpu_custom_call.1} parent=5 // pred_fallthru
      _
    %p444 = scmp.le.s32.totalorder 1, %s18
    %p445 = scmp.lt.s32.totalorder %s18, 9
    %p446 = pnand %p444, %p445
    %p447 = pneg %p446
    // Predicated region
    $region65: #{tpu_custom_call.1} parent=5 // pred_check
      _
    $region66: #{tpu_custom_call.1} parent=5 // pred_check_branch
      %449 = sbr.rel (%p446) target = $region68
    $region67: #{tpu_custom_call.1} parent=5 // pred_region
      %s450 = ssub.s32 %s18, 1
      %s451 = smul.u32 2, %s28
      %p452 = scmp.lt.s32.totalorder %s27, 1
      %s453 = scalar_select %p452, %s27, 1
      %p454 = scmp.lt.s32.totalorder %s451, 7
      %s455 = scalar_select %p454, %s451, 7
      %s456 = smul.addr %s453, 8
      %s457 = sadd.s32 %s455, %s456
      %s458 = smul.addr %s457, 8
      %s459 = scalar_lea.vmem %s0, %s458
      %p460 = pneg %p58
      %p461 = pneg %p55
      %s462 = smul.u32 %s28, 2
      %s463 = ssub.s32 %s462, 1
      %p464 = scmp.gt.s32.totalorder %s463, 0
      %s465 = scalar_select %p464, %s463, 0
      %p466 = scmp.lt.s32.totalorder %s27, 1
      %s467 = scalar_select %p466, %s27, 1
      %p468 = scmp.lt.s32.totalorder %s465, 7
      %s469 = scalar_select %p468, %s465, 7
      %s470 = smul.addr %s467, 8
      %s471 = sadd.s32 %s469, %s470
      %s472 = smul.addr %s471, 8
      %s473 = scalar_lea.vmem %s1, %s472
      %p474 = pneg %p94
      %p475 = pneg %p91
      %s476 = smul.u32 %s28, 2
      %s477 = sadd.s32 %s476, 2
      %p478 = scmp.lt.s32.totalorder %s477, 7
      %s479 = scalar_select %p478, %s477, 7
      %p480 = scmp.lt.s32.totalorder %s27, 1
      %s481 = scalar_select %p480, %s27, 1
      %p482 = scmp.lt.s32.totalorder %s479, 7
      %s483 = scalar_select %p482, %s479, 7
      %s484 = smul.addr %s481, 8
      %s485 = sadd.s32 %s483, %s484
      %s486 = smul.addr %s485, 8
      %s487 = scalar_lea.vmem %s2, %s486
      %p488 = pneg %p130
      %p489 = pneg %p127
      %p490 = pneg %p151
      %p491 = pneg %p148
      %p492 = pneg %p172
      %p493 = pneg %p169
      %p494 = pneg %p193
      %p495 = pneg %p190
      %p496 = pneg %p214
      %p497 = pneg %p211
      %p498 = pneg %p235
      %p499 = pneg %p232
      %p500 = pneg %p256
      %p501 = pneg %p253
      %p502 = pneg %p277
      %p503 = pneg %p274
      %p504 = pneg %p298
      %p505 = pneg %p295
      %p506 = pneg %p319
      %p507 = pneg %p316
      %p508 = pneg %p347
      %p509 = pneg %p344
      %s510 = smul.u32 2, %s28
      %p511 = scmp.lt.s32.totalorder %s27, 1
      %s512 = scalar_select %p511, %s27, 1
      %p513 = scmp.lt.s32.totalorder %s510, 7
      %s514 = scalar_select %p513, %s510, 7
      %s515 = smul.addr %s512, 8
      %s516 = sadd.s32 %s514, %s515
      %s517 = smul.addr %s516, 8
      %s518 = scalar_lea.vmem %s12, %s517
      %s519 = smul.u32 2, %s28
      %p520 = scmp.lt.s32.totalorder %s27, 1
      %s521 = scalar_select %p520, %s27, 1
      %p522 = scmp.lt.s32.totalorder %s519, 7
      %s523 = scalar_select %p522, %s519, 7
      %s524 = smul.addr %s521, 8
      %s525 = sadd.s32 %s523, %s524
      %s526 = smul.addr %s525, 8
      %s527 = scalar_lea.vmem %s0, %s526
      %s528 = smul.u32 2, %s28
      %s529 = smul.u32 %s28, 2
      %s530 = ssub.s32 %s529, 1
      %p531 = scmp.gt.s32.totalorder %s530, 0
      %s532 = scalar_select %p531, %s530, 0
      %p533 = scmp.lt.s32.totalorder %s27, 1
      %s534 = scalar_select %p533, %s27, 1
      %p535 = scmp.lt.s32.totalorder %s532, 7
      %s536 = scalar_select %p535, %s532, 7
      %s537 = smul.addr %s534, 8
      %s538 = sadd.s32 %s536, %s537
      %s539 = smul.addr %s538, 8
      %s540 = scalar_lea.vmem %s1, %s539
      %s541 = smul.u32 %s28, 2
      %s542 = ssub.s32 %s541, 1
      %p543 = scmp.gt.s32.totalorder %s542, 0
      %s544 = scalar_select %p543, %s542, 0
      %s545 = smul.u32 %s28, 2
      %s546 = sadd.s32 %s545, 2
      %p547 = scmp.lt.s32.totalorder %s546, 7
      %s548 = scalar_select %p547, %s546, 7
      %p549 = scmp.lt.s32.totalorder %s27, 1
      %s550 = scalar_select %p549, %s27, 1
      %p551 = scmp.lt.s32.totalorder %s548, 7
      %s552 = scalar_select %p551, %s548, 7
      %s553 = smul.addr %s550, 8
      %s554 = sadd.s32 %s552, %s553
      %s555 = smul.addr %s554, 8
      %s556 = scalar_lea.vmem %s2, %s555
      %s557 = smul.u32 %s28, 2
      %s558 = sadd.s32 %s557, 2
      %p559 = scmp.lt.s32.totalorder %s558, 7
      %s560 = scalar_select %p559, %s558, 7
      %s561 = smul.u32 2, %s28
      %p562 = scmp.lt.s32.totalorder %s27, 1
      %s563 = scalar_select %p562, %s27, 1
      %p564 = scmp.lt.s32.totalorder %s561, 7
      %s565 = scalar_select %p564, %s561, 7
      %s566 = smul.addr %s563, 8
      %s567 = sadd.s32 %s565, %s566
      %s568 = smul.addr %s567, 8
      %s569 = scalar_lea.vmem %s12, %s568
      %s570 = smul.u32 2, %s28
      %p572 = scmp.eq.s32.totalorder %s28, 0
      %p573 = scmp.eq.s32.totalorder %s28, 3
      %v574 = vld [vmem:[%s527] sm:$0xff]
      %v575 = vld [vmem:[%s527 + $0x8] sm:$0xff]
      %v576 = vld [vmem:[%s3] sm:$0xf]
      %v577 = vld [vmem:[%s3 + $0x4] sm:$0xf]
      %v578 = vld [vmem:[%s3 + $0x8] sm:$0xf]
      %v579 = vld [vmem:[%s3 + $0xc] sm:$0xf]
      %v580 = vld [vmem:[%s4] sm:$0x1]
      %v581 = vld [vmem:[%s5] sm:$0x1]
      %v582 = vpack.c.bf16 %v575, %v574
      %v587 = vunpack.c.l.b16 %v576
      %v588 = vunpack.c.l.b16 %v577
      %v589 = vunpack.c.l.b16 %v578
      %v590 = vunpack.c.l.b16 %v579
      %v591 = vpack.c.b16 %v588, %v587
      %v592 = vpack.c.b16 %v590, %v589
      %vm595 = vcmask 261120
      %v597 = vsel %vm595, %v582, 0
      %599 = vmatprep.subr.bf16.mxu0 0
      %600 = vmatpush1.bf16.msra.mxu0 0
      %601 = vmatprep.subr.bf16.mxu0 0
      %602 = vmatpush1.bf16.msra.mxu0 0
      %603 = vmatprep.subr.bf16.mxu0 0
      %604 = vmatpush1.bf16.msra.mxu0 0
      %605 = vmatprep.subr.bf16.mxu0 0
      %606 = vmatpush1.bf16.msra.mxu0 0
      %607 = vmatprep.subr.bf16.mxu0 0
      %608 = vmatpush1.bf16.msra.mxu0 0
      %609 = vmatprep.subr.bf16.mxu0 0
      %610 = vmatpush1.bf16.msra.mxu0 0
      %611 = vmatprep.subr.bf16.mxu0 0
      %612 = vmatpush1.bf16.msra.mxu0 %v592
      %613 = vmatprep.subr.bf16.mxu0 0
      %614 = vmatpush1.bf16.msra.mxu0 %v591
      %615 = vmatprep.subr.bf16.mxu0 0
      %616 = vmatpush2.bf16.msra.mxu0 0
      %617 = vmatprep.subr.bf16.mxu0 0
      %618 = vmatpush2.bf16.msra.mxu0 0
      %619 = vmatprep.subr.bf16.mxu0 0
      %620 = vmatpush2.bf16.msra.mxu0 0
      %621 = vmatprep.subr.bf16.mxu0 0
      %622 = vmatpush2.bf16.msra.mxu0 0
      %623 = vmatprep.subr.bf16.mxu0 0
      %624 = vmatpush2.bf16.msra.mxu0 0
      %625 = vmatprep.subr.bf16.mxu0 0
      %626 = vmatpush2.bf16.msra.mxu0 0
      %627 = vmatprep.subr.bf16.mxu0 0
      %628 = vmatpush2.bf16.msra.mxu0 0
      %629 = vmatprep.subr.bf16.mxu0 0
      %630 = vmatpush2.bf16.msra.mxu0 0
      %631 = vmatprep.mubr.bf16.mxu0 0
      %632 = vmatmul.mubr.bf16.gmra.mxu0 %v597
      %v633 = vpop.f32.mrf.mxu0
      %v634 = vadd.f32 0.0, %v633
      %v635 = vpop.f32.mrf.mxu0
      %v636 = vpop.f32.mrf.mxu0
      %v637 = vadd.f32 0.0, %v636
      %v638 = vpop.f32.mrf.mxu0
      %639 = vdwg.mxu0
      %v641 = vlaneseq
      %v642 = vshrl.u32 %v641, 7
      %v643 = vsub.s32 0, %v642
      %v644 = vrot.slane %v580, %v643
      %v646 = vmul.f32 %v634, %v644
      %v647 = vmul.f32 %v637, %v644
      %v649 = vlaneseq
      %v650 = vshrl.u32 %v649, 7
      %v651 = vsub.s32 0, %v650
      %v652 = vrot.slane %v581, %v651
      %v654 = vadd.f32 %v646, %v652
      %v655 = vadd.f32 %v647, %v652
      %v656 = vmax.f32 %v654, 0.0
      %v657 = vmax.f32 %v655, 0.0
      %s658 = scalar_select %p572, 0.0, 1.0
      %s659 = scalar_select %p573, 0.0, 1.0
      %v660 = vld [vmem:[%s540] sm:$0xff]
      %v661 = vpack.c.bf16 %v660, %v660
      %v663 = vsel %vm595, %v661, 0
      %665 = vmatprep.subr.bf16.mxu0 0
      %666 = vmatpush1.bf16.msra.mxu0 0
      %667 = vmatprep.subr.bf16.mxu0 0
      %668 = vmatpush1.bf16.msra.mxu0 0
      %669 = vmatprep.subr.bf16.mxu0 0
      %670 = vmatpush1.bf16.msra.mxu0 0
      %671 = vmatprep.subr.bf16.mxu0 0
      %672 = vmatpush1.bf16.msra.mxu0 0
      %673 = vmatprep.subr.bf16.mxu0 0
      %674 = vmatpush1.bf16.msra.mxu0 0
      %675 = vmatprep.subr.bf16.mxu0 0
      %676 = vmatpush1.bf16.msra.mxu0 0
      %677 = vmatprep.subr.bf16.mxu0 0
      %678 = vmatpush1.bf16.msra.mxu0 %v592
      %679 = vmatprep.subr.bf16.mxu0 0
      %680 = vmatpush1.bf16.msra.mxu0 %v591
      %681 = vmatprep.subr.bf16.mxu0 0
      %682 = vmatpush2.bf16.msra.mxu0 0
      %683 = vmatprep.subr.bf16.mxu0 0
      %684 = vmatpush2.bf16.msra.mxu0 0
      %685 = vmatprep.subr.bf16.mxu0 0
      %686 = vmatpush2.bf16.msra.mxu0 0
      %687 = vmatprep.subr.bf16.mxu0 0
      %688 = vmatpush2.bf16.msra.mxu0 0
      %689 = vmatprep.subr.bf16.mxu0 0
      %690 = vmatpush2.bf16.msra.mxu0 0
      %691 = vmatprep.subr.bf16.mxu0 0
      %692 = vmatpush2.bf16.msra.mxu0 0
      %693 = vmatprep.subr.bf16.mxu0 0
      %694 = vmatpush2.bf16.msra.mxu0 0
      %695 = vmatprep.subr.bf16.mxu0 0
      %696 = vmatpush2.bf16.msra.mxu0 0
      %697 = vmatprep.mubr.bf16.mxu0 0
      %698 = vmatmul.mubr.bf16.gmra.mxu0 %v663
      %v699 = vpop.f32.mrf.mxu0
      %v700 = vadd.f32 0.0, %v699
      %v701 = vpop.f32.mrf.mxu0
      %v702 = vpop.f32.mrf.mxu0
      %v703 = vpop.f32.mrf.mxu0
      %704 = vdwg.mxu0
      %v705 = vmul.f32 %v700, %v644
      %v706 = vadd.f32 %v705, %v652
      %v707 = vmax.f32 %v706, 0.0
      %v708 = vstv %s658
      %v709 = vmul.f32 %v707, %v708
      %v710 = vld [vmem:[%s556] sm:$0xff]
      %v711 = vpack.c.bf16 %v710, %v710
      %v713 = vsel %vm595, %v711, 0
      %715 = vmatprep.subr.bf16.mxu0 0
      %716 = vmatpush1.bf16.msra.mxu0 0
      %717 = vmatprep.subr.bf16.mxu0 0
      %718 = vmatpush1.bf16.msra.mxu0 0
      %719 = vmatprep.subr.bf16.mxu0 0
      %720 = vmatpush1.bf16.msra.mxu0 0
      %721 = vmatprep.subr.bf16.mxu0 0
      %722 = vmatpush1.bf16.msra.mxu0 0
      %723 = vmatprep.subr.bf16.mxu0 0
      %724 = vmatpush1.bf16.msra.mxu0 0
      %725 = vmatprep.subr.bf16.mxu0 0
      %726 = vmatpush1.bf16.msra.mxu0 0
      %727 = vmatprep.subr.bf16.mxu0 0
      %728 = vmatpush1.bf16.msra.mxu0 %v592
      %729 = vmatprep.subr.bf16.mxu0 0
      %730 = vmatpush1.bf16.msra.mxu0 %v591
      %731 = vmatprep.subr.bf16.mxu0 0
      %732 = vmatpush2.bf16.msra.mxu0 0
      %733 = vmatprep.subr.bf16.mxu0 0
      %734 = vmatpush2.bf16.msra.mxu0 0
      %735 = vmatprep.subr.bf16.mxu0 0
      %736 = vmatpush2.bf16.msra.mxu0 0
      %737 = vmatprep.subr.bf16.mxu0 0
      %738 = vmatpush2.bf16.msra.mxu0 0
      %739 = vmatprep.subr.bf16.mxu0 0
      %740 = vmatpush2.bf16.msra.mxu0 0
      %741 = vmatprep.subr.bf16.mxu0 0
      %742 = vmatpush2.bf16.msra.mxu0 0
      %743 = vmatprep.subr.bf16.mxu0 0
      %744 = vmatpush2.bf16.msra.mxu0 0
      %745 = vmatprep.subr.bf16.mxu0 0
      %746 = vmatpush2.bf16.msra.mxu0 0
      %747 = vmatprep.mubr.bf16.mxu0 0
      %748 = vmatmul.mubr.bf16.gmra.mxu0 %v713
      %v749 = vpop.f32.mrf.mxu0
      %v750 = vadd.f32 0.0, %v749
      %v751 = vpop.f32.mrf.mxu0
      %v752 = vpop.f32.mrf.mxu0
      %v753 = vpop.f32.mrf.mxu0
      %754 = vdwg.mxu0
      %v755 = vmul.f32 %v750, %v644
      %v756 = vadd.f32 %v755, %v652
      %v757 = vmax.f32 %v756, 0.0
      %v758 = vstv %s659
      %v759 = vmul.f32 %v757, %v758
      %vm760 = vcmask 64512
      %761 = vst.msk [vmem:[#allocation2 + $0x8] sm:$0xff] %vm760, %v709
      %762 = vst.msk [vmem:[#allocation2 + $0x10] sm:$0xff] %vm760, %v656
      %763 = vst.msk [vmem:[#allocation2 + $0x18] sm:$0xff] %vm760, %v657
      %764 = vst.msk [vmem:[#allocation2 + $0x20] sm:$0xff] %vm760, %v759
      %v765 = vlaneseq
      %v766 = vshrl.u32 %v765, 7
      %v767 = vadd.s32 %v766, 8
      %vm768 = vcmp.lt.s32.totalorder %v766, 0
      %v769 = vsub.s32 0, %v766
      %v770 = vsel %vm768, %v769, %v766
      %v771 = vshrl.u32 %v770, 3
      %v772 = vand.u32 %v770, 7
      %v773 = vsub.s32 0, %v772
      %v774 = vsel %vm768, %v773, %v772
      %vm775 = vcmp.lt.s32.totalorder %v767, 0
      %v776 = vsub.s32 0, %v767
      %v777 = vsel %vm775, %v776, %v767
      %v778 = vshrl.u32 %v777, 3
      %v779 = vand.u32 %v777, 7
      %v780 = vsub.s32 0, %v779
      %v781 = vsel %vm775, %v780, %v779
      %vm782 = vcmp.ne.s32.totalorder %v774, 0
      %vm783 = vcmp.ne.s32.totalorder %v781, 0
      %vm784 = vcmp.lt.s32.totalorder %v774, 0
      %vm785 = vcmp.lt.s32.totalorder %v781, 0
      %vm786 = vmand %vm784, %vm782
      %vm787 = vmand %vm785, %vm783
      %v788 = vadd.s32 %v774, 8
      %v789 = vadd.s32 %v781, 8
      %v790 = vsel %vm786, %v788, %v774
      %v791 = vsel %vm787, %v789, %v781
      %vm792 = vcmp.ge.s32.totalorder %v790, 1
      %vm793 = vcmp.ge.s32.totalorder %v791, 1
      %vm794 = vcmp.lt.s32.totalorder %v790, 7
      %vm795 = vcmp.lt.s32.totalorder %v791, 7
      %v796 = vld [vmem:[#allocation2 + $0x7] sm:$0xff]
      %v797 = vld [vmem:[#allocation2 + $0xf] sm:$0xff]
      %v798 = vsel %vm792, 1, 0
      %v799 = vsel %vm793, 1, 0
      %vm800 = vcmp.eq.s32.totalorder %v798, 1
      %vm801 = vcmp.eq.s32.totalorder %v799, 1
      %v802 = vsel %vm800, %v796, 0.0
      %v803 = vsel %vm801, %v797, 0.0
      %v804 = vpack.c.bf16 %v803, %v802
      %v806 = vunpack.c.l.b16 %v804
      %v807 = vunpack.c.h.b16 %v804
      %v808 = vpack.c.b16 %v806, %v806
      %v809 = vpack.c.b16 %v807, %v807
      %vm812 = vcmask 60416
      %813 = vst.msk [vmem:[#allocation3] sm:$0xf] %vm812, %v808
      %814 = vst.msk [vmem:[#allocation3 + $0x4] sm:$0xf] %vm812, %v809
      %v815 = vld [vmem:[#allocation2 + $0x8] sm:$0xff]
      %v816 = vld [vmem:[#allocation2 + $0x10] sm:$0xff]
      %v817 = vpack.c.bf16 %v816, %v815
      %v819 = vunpack.c.l.b16 %v817
      %v820 = vunpack.c.h.b16 %v817
      %v821 = vpack.c.b16 %v819, %v819
      %v822 = vpack.c.b16 %v820, %v820
      %823 = vrot.lane.b32.xlu0 %v821, 8
      %v824 = vpop.permute.xlu0 %823
      %825 = vrot.lane.b32.xlu0 %v822, 8
      %v826 = vpop.permute.xlu0 %825
      %vm829 = vcmask 126016
      %830 = vst.msk [vmem:[#allocation3] sm:$0xf] %vm829, %v824
      %831 = vst.msk [vmem:[#allocation3 + $0x4] sm:$0xf] %vm829, %v826
      %v832 = vld [vmem:[#allocation2 + $0x9] sm:$0xff]
      %v833 = vld [vmem:[#allocation2 + $0x11] sm:$0xff]
      %v834 = vsel %vm794, 1, 0
      %v835 = vsel %vm795, 1, 0
      %vm836 = vcmp.eq.s32.totalorder %v834, 1
      %vm837 = vcmp.eq.s32.totalorder %v835, 1
      %v838 = vsel %vm836, %v832, 0.0
      %v839 = vsel %vm837, %v833, 0.0
      %v840 = vpack.c.bf16 %v839, %v838
      %v842 = vunpack.c.l.b16 %v840
      %v843 = vunpack.c.h.b16 %v840
      %v844 = vpack.c.b16 %v842, %v842
      %v845 = vpack.c.b16 %v843, %v843
      %846 = vrot.lane.b32.xlu0 %v844, 16
      %v847 = vpop.permute.xlu0 %846
      %848 = vrot.lane.b32.xlu0 %v845, 16
      %v849 = vpop.permute.xlu0 %848
      %vm852 = vcmask 191616
      %853 = vst.msk [vmem:[#allocation3] sm:$0xf] %vm852, %v847
      %854 = vst.msk [vmem:[#allocation3 + $0x4] sm:$0xf] %vm852, %v849
      %v855 = vld [vmem:[#allocation2 + $0xf] sm:$0xff]
      %v856 = vld [vmem:[#allocation2 + $0x17] sm:$0xff]
      %v857 = vsel %vm800, %v855, 0.0
      %v858 = vsel %vm801, %v856, 0.0
      %v859 = vpack.c.bf16 %v858, %v857
      %v861 = vunpack.c.l.b16 %v859
      %v862 = vunpack.c.h.b16 %v859
      %v863 = vpack.c.b16 %v861, %v861
      %v864 = vpack.c.b16 %v862, %v862
      %865 = vrot.lane.b32.xlu0 %v863, 24
      %v866 = vpop.permute.xlu0 %865
      %867 = vrot.lane.b32.xlu0 %v864, 24
      %v868 = vpop.permute.xlu0 %867
      %vm871 = vcmask 257216
      %872 = vst.msk [vmem:[#allocation3] sm:$0xf] %vm871, %v866
      %873 = vst.msk [vmem:[#allocation3 + $0x4] sm:$0xf] %vm871, %v868
      %v874 = vld [vmem:[#allocation2 + $0x10] sm:$0xff]
      %v875 = vld [vmem:[#allocation2 + $0x18] sm:$0xff]
      %v876 = vpack.c.bf16 %v875, %v874
      %v878 = vunpack.c.l.b16 %v876
      %v879 = vunpack.c.h.b16 %v876
      %v880 = vpack.c.b16 %v878, %v878
      %v881 = vpack.c.b16 %v879, %v879
      %882 = vrot.lane.b32.xlu0 %v880, 32
      %v883 = vpop.permute.xlu0 %882
      %884 = vrot.lane.b32.xlu0 %v881, 32
      %v885 = vpop.permute.xlu0 %884
      %vm888 = vcmask 322816
      %889 = vst.msk [vmem:[#allocation3] sm:$0xf] %vm888, %v883
      %890 = vst.msk [vmem:[#allocation3 + $0x4] sm:$0xf] %vm888, %v885
      %v891 = vld [vmem:[#allocation2 + $0x11] sm:$0xff]
      %v892 = vld [vmem:[#allocation2 + $0x19] sm:$0xff]
      %v893 = vsel %vm836, %v891, 0.0
      %v894 = vsel %vm837, %v892, 0.0
      %v895 = vpack.c.bf16 %v894, %v893
      %v897 = vunpack.c.l.b16 %v895
      %v898 = vunpack.c.h.b16 %v895
      %v899 = vpack.c.b16 %v897, %v897
      %v900 = vpack.c.b16 %v898, %v898
      %901 = vrot.lane.b32.xlu0 %v899, 40
      %v902 = vpop.permute.xlu0 %901
      %903 = vrot.lane.b32.xlu0 %v900, 40
      %v904 = vpop.permute.xlu0 %903
      %vm907 = vcmask 388416
      %908 = vst.msk [vmem:[#allocation3] sm:$0xf] %vm907, %v902
      %909 = vst.msk [vmem:[#allocation3 + $0x4] sm:$0xf] %vm907, %v904
      %v910 = vld [vmem:[#allocation2 + $0x17] sm:$0xff]
      %v911 = vld [vmem:[#allocation2 + $0x1f] sm:$0xff]
      %v912 = vsel %vm800, %v910, 0.0
      %v913 = vsel %vm801, %v911, 0.0
      %v914 = vpack.c.bf16 %v913, %v912
      %v916 = vunpack.c.l.b16 %v914
      %v917 = vunpack.c.h.b16 %v914
      %v918 = vpack.c.b16 %v916, %v916
      %v919 = vpack.c.b16 %v917, %v917
      %920 = vrot.lane.b32.xlu0 %v918, 48
      %v921 = vpop.permute.xlu0 %920
      %922 = vrot.lane.b32.xlu0 %v919, 48
      %v923 = vpop.permute.xlu0 %922
      %vm926 = vcmask 454016
      %927 = vst.msk [vmem:[#allocation3] sm:$0xf] %vm926, %v921
      %928 = vst.msk [vmem:[#allocation3 + $0x4] sm:$0xf] %vm926, %v923
      %v929 = vld [vmem:[#allocation2 + $0x18] sm:$0xff]
      %v930 = vld [vmem:[#allocation2 + $0x20] sm:$0xff]
      %v931 = vpack.c.bf16 %v930, %v929
      %v933 = vunpack.c.l.b16 %v931
      %v934 = vunpack.c.h.b16 %v931
      %v935 = vpack.c.b16 %v933, %v933
      %v936 = vpack.c.b16 %v934, %v934
      %937 = vrot.lane.b32.xlu0 %v935, 56
      %v938 = vpop.permute.xlu0 %937
      %939 = vrot.lane.b32.xlu0 %v936, 56
      %v940 = vpop.permute.xlu0 %939
      %vm943 = vcmask 519616
      %944 = vst.msk [vmem:[#allocation3] sm:$0xf] %vm943, %v938
      %945 = vst.msk [vmem:[#allocation3 + $0x4] sm:$0xf] %vm943, %v940
      %v946 = vld [vmem:[#allocation2 + $0x19] sm:$0xff]
      %v947 = vld [vmem:[#allocation2 + $0x21] sm:$0xff]
      %v948 = vsel %vm836, %v946, 0.0
      %v949 = vsel %vm837, %v947, 0.0
      %v950 = vpack.c.bf16 %v949, %v948
      %v952 = vunpack.c.l.b16 %v950
      %v953 = vunpack.c.h.b16 %v950
      %v954 = vpack.c.b16 %v952, %v952
      %v955 = vpack.c.b16 %v953, %v953
      %956 = vrot.lane.b32.xlu0 %v954, 64
      %v957 = vpop.permute.xlu0 %956
      %958 = vrot.lane.b32.xlu0 %v955, 64
      %v959 = vpop.permute.xlu0 %958
      %vm962 = vcmask 585216
      %963 = vst.msk [vmem:[#allocation3] sm:$0xf] %vm962, %v957
      %964 = vst.msk [vmem:[#allocation3 + $0x4] sm:$0xf] %vm962, %v959
      %v965 = vld [vmem:[#allocation3] sm:$0xf]
      %v966 = vld [vmem:[#allocation3 + $0x4] sm:$0xf]
      %v967 = vld [vmem:[%s6] sm:$0xf]
      %v968 = vld [vmem:[%s6 + $0x4] sm:$0xf]
      %v969 = vld [vmem:[%s6 + $0x8] sm:$0xf]
      %v970 = vld [vmem:[%s6 + $0xc] sm:$0xf]
      %v971 = vld [vmem:[%s6 + $0x10] sm:$0xf]
      %v972 = vld [vmem:[%s6 + $0x14] sm:$0xf]
      %v973 = vld [vmem:[%s6 + $0x18] sm:$0xf]
      %v974 = vld [vmem:[%s6 + $0x1c] sm:$0xf]
      %v975 = vld [vmem:[%s6 + $0x20] sm:$0xf]
      %v978 = vunpack.c.l.b16 %v965
      %v979 = vunpack.c.l.b16 %v966
      %v980 = vpack.c.b16 %v979, %v978
      %v990 = vunpack.c.l.b16 %v967
      %v991 = vunpack.c.l.b16 %v968
      %v992 = vunpack.c.l.b16 %v969
      %v993 = vunpack.c.l.b16 %v970
      %v994 = vunpack.c.l.b16 %v971
      %v995 = vunpack.c.l.b16 %v972
      %v996 = vunpack.c.l.b16 %v973
      %v997 = vunpack.c.l.b16 %v974
      %v998 = vunpack.c.l.b16 %v975
      %v999 = vpack.c.b16 %v991, %v990
      %v1000 = vpack.c.b16 %v993, %v992
      %v1001 = vpack.c.b16 %v995, %v994
      %v1002 = vpack.c.b16 %v997, %v996
      %v1003 = vpack.c.b16 %v998, %v998
      %vm1008 = vcmask 588800
      %v1010 = vsel %vm1008, %v980, 0
      %vm1012 = vcmask 1043456
      %v1014 = vsel %vm1012, %v1003, 0
      %1016 = vmatprep.subr.bf16.mxu0 0
      %1017 = vmatpush1.bf16.msra.mxu0 0
      %1018 = vmatprep.subr.bf16.mxu0 0
      %1019 = vmatpush1.bf16.msra.mxu0 0
      %1020 = vmatprep.subr.bf16.mxu0 0
      %1021 = vmatpush1.bf16.msra.mxu0 0
      %1022 = vmatprep.subr.bf16.mxu0 0
      %1023 = vmatpush1.bf16.msra.mxu0 %v1014
      %1024 = vmatprep.subr.bf16.mxu0 0
      %1025 = vmatpush1.bf16.msra.mxu0 %v1002
      %1026 = vmatprep.subr.bf16.mxu0 0
      %1027 = vmatpush1.bf16.msra.mxu0 %v1001
      %1028 = vmatprep.subr.bf16.mxu0 0
      %1029 = vmatpush1.bf16.msra.mxu0 %v1000
      %1030 = vmatprep.subr.bf16.mxu0 0
      %1031 = vmatpush1.bf16.msra.mxu0 %v999
      %1032 = vmatprep.subr.bf16.mxu0 0
      %1033 = vmatpush2.bf16.msra.mxu0 0
      %1034 = vmatprep.subr.bf16.mxu0 0
      %1035 = vmatpush2.bf16.msra.mxu0 0
      %1036 = vmatprep.subr.bf16.mxu0 0
      %1037 = vmatpush2.bf16.msra.mxu0 0
      %1038 = vmatprep.subr.bf16.mxu0 0
      %1039 = vmatpush2.bf16.msra.mxu0 0
      %1040 = vmatprep.subr.bf16.mxu0 0
      %1041 = vmatpush2.bf16.msra.mxu0 0
      %1042 = vmatprep.subr.bf16.mxu0 0
      %1043 = vmatpush2.bf16.msra.mxu0 0
      %1044 = vmatprep.subr.bf16.mxu0 0
      %1045 = vmatpush2.bf16.msra.mxu0 0
      %1046 = vmatprep.subr.bf16.mxu0 0
      %1047 = vmatpush2.bf16.msra.mxu0 0
      %1048 = vmatprep.mubr.bf16.mxu0 0
      %1049 = vmatmul.mubr.bf16.gmra.mxu0 %v1010
      %v1050 = vpop.f32.mrf.mxu0
      %v1051 = vadd.f32 0.0, %v1050
      %v1052 = vpop.f32.mrf.mxu0
      %v1053 = vpop.f32.mrf.mxu0
      %v1054 = vadd.f32 0.0, %v1053
      %v1055 = vpop.f32.mrf.mxu0
      %1056 = vdwg.mxu0
      %v1057 = vld [vmem:[%s7] sm:$0x1]
      %v1059 = vlaneseq
      %v1060 = vshrl.u32 %v1059, 7
      %v1061 = vsub.s32 0, %v1060
      %v1062 = vrot.slane %v1057, %v1061
      %v1064 = vmul.f32 %v1051, %v1062
      %v1065 = vmul.f32 %v1054, %v1062
      %v1066 = vld [vmem:[%s8] sm:$0x1]
      %v1068 = vlaneseq
      %v1069 = vshrl.u32 %v1068, 7
      %v1070 = vsub.s32 0, %v1069
      %v1071 = vrot.slane %v1066, %v1070
      %v1073 = vadd.f32 %v1064, %v1071
      %v1074 = vadd.f32 %v1065, %v1071
      %v1075 = vmax.f32 %v1073, 0.0
      %v1076 = vmax.f32 %v1074, 0.0
      %v1077 = vpack.c.bf16 %v1076, %v1075
      %v1078 = vld [vmem:[%s9] sm:$0xf]
      %v1080 = vsel %vm760, %v1077, 0
      %v1083 = vsel %vm1012, %v1078, 0
      %1085 = vmatprep.subr.bf16.mxu0 0
      %1086 = vmatpush1.bf16.msra.mxu0 0
      %1087 = vmatprep.subr.bf16.mxu0 0
      %1088 = vmatpush1.bf16.msra.mxu0 0
      %1089 = vmatprep.subr.bf16.mxu0 0
      %1090 = vmatpush1.bf16.msra.mxu0 0
      %1091 = vmatprep.subr.bf16.mxu0 0
      %1092 = vmatpush1.bf16.msra.mxu0 0
      %1093 = vmatprep.subr.bf16.mxu0 0
      %1094 = vmatpush1.bf16.msra.mxu0 0
      %1095 = vmatprep.subr.bf16.mxu0 0
      %1096 = vmatpush1.bf16.msra.mxu0 0
      %1097 = vmatprep.subr.bf16.mxu0 0
      %1098 = vmatpush1.bf16.msra.mxu0 0
      %1099 = vmatprep.subr.bf16.mxu0 0
      %1100 = vmatpush1.bf16.msra.mxu0 %v1083
      %1101 = vmatprep.subr.bf16.mxu0 0
      %1102 = vmatpush2.bf16.msra.mxu0 0
      %1103 = vmatprep.subr.bf16.mxu0 0
      %1104 = vmatpush2.bf16.msra.mxu0 0
      %1105 = vmatprep.subr.bf16.mxu0 0
      %1106 = vmatpush2.bf16.msra.mxu0 0
      %1107 = vmatprep.subr.bf16.mxu0 0
      %1108 = vmatpush2.bf16.msra.mxu0 0
      %1109 = vmatprep.subr.bf16.mxu0 0
      %1110 = vmatpush2.bf16.msra.mxu0 0
      %1111 = vmatprep.subr.bf16.mxu0 0
      %1112 = vmatpush2.bf16.msra.mxu0 0
      %1113 = vmatprep.subr.bf16.mxu0 0
      %1114 = vmatpush2.bf16.msra.mxu0 0
      %1115 = vmatprep.subr.bf16.mxu0 0
      %1116 = vmatpush2.bf16.msra.mxu0 0
      %1117 = vmatprep.mubr.bf16.mxu0 0
      %1118 = vmatmul.mubr.bf16.gmra.mxu0 %v1080
      %v1119 = vpop.f32.mrf.mxu0
      %v1120 = vadd.f32 0.0, %v1119
      %v1121 = vpop.f32.mrf.mxu0
      %v1122 = vpop.f32.mrf.mxu0
      %v1123 = vadd.f32 0.0, %v1122
      %v1124 = vpop.f32.mrf.mxu0
      %1125 = vdwg.mxu0
      %v1126 = vld [vmem:[%s10] sm:$0x1]
      %v1128 = vlaneseq
      %v1129 = vshrl.u32 %v1128, 7
      %v1130 = vsub.s32 0, %v1129
      %v1131 = vrot.slane %v1126, %v1130
      %v1133 = vmul.f32 %v1120, %v1131
      %v1134 = vmul.f32 %v1123, %v1131
      %v1135 = vld [vmem:[%s11] sm:$0x1]
      %v1137 = vlaneseq
      %v1138 = vshrl.u32 %v1137, 7
      %v1139 = vsub.s32 0, %v1138
      %v1140 = vrot.slane %v1135, %v1139
      %v1142 = vadd.f32 %v1133, %v1140
      %v1143 = vadd.f32 %v1134, %v1140
      %v1144 = vadd.f32 %v1142, %v574
      %v1145 = vadd.f32 %v1143, %v575
      %v1146 = vmax.f32 %v1144, 0.0
      %v1147 = vmax.f32 %v1145, 0.0
      %1148 = vst.msk [vmem:[%s569] sm:$0xff] %vm595, %v1146
      %1149 = vst.msk [vmem:[%s569 + $0x8] sm:$0xff] %vm595, %v1147
      %s1150 = smul.u32 2, %s28
      %p1151 = scmp.lt.s32.totalorder %s27, 1
      %s1152 = scalar_select %p1151, %s27, 1
      %p1153 = scmp.lt.s32.totalorder %s1150, 7
      %s1154 = scalar_select %p1153, %s1150, 7
      %s1155 = smul.addr %s1152, 8
      %s1156 = sadd.s32 %s1154, %s1155
      %s1157 = smul.addr %s1156, 8
      %s1158 = scalar_lea.vmem %s12, %s1157
      // Predicated region
      $region69: #{tpu_custom_call.1} parent=67 // pred_check
        %p1159 = pneg %p344
      $region70: #{tpu_custom_call.1} parent=67 // pred_check_branch
        %1161 = sbr.rel (%p1159) target = $region72
      $region71: #{tpu_custom_call.1} parent=67 // pred_region
        %s1162 = smul.u32 2, %s28
      $region72: #{tpu_custom_call.1} parent=67 // pred_fallthru
        _
    $region68: #{tpu_custom_call.1} parent=5 // pred_fallthru
      _
    %p1163 = scmp.le.s32.totalorder 2, %s18
    // Predicated region
    $region73: #{tpu_custom_call.1} parent=5 // pred_check
      %p1164 = pneg %p1163
    $region74: #{tpu_custom_call.1} parent=5 // pred_check_branch
      %1166 = sbr.rel (%p1164) target = $region76
    $region75: #{tpu_custom_call.1} parent=5 // pred_region
      %s1167 = ssub.s32 %s18, 2
      // Predicated region
      $region77: #{tpu_custom_call.1} parent=75 // pred_check
        %p1168 = pneg %p350
      $region78: #{tpu_custom_call.1} parent=75 // pred_check_branch
        %1170 = sbr.rel (%p1168) target = $region80
      $region79: #{tpu_custom_call.1} parent=75 // pred_region
        %s1171 = smul.u32 2, %s30
        %p1172 = scmp.lt.s32.totalorder %s29, 1
        %s1173 = scalar_select %p1172, %s29, 1
        %p1174 = scmp.lt.s32.totalorder %s1171, 7
        %s1175 = scalar_select %p1174, %s1171, 7
        %s1176 = smul.addr %s1173, 8
        %s1177 = sadd.s32 %s1175, %s1176
        %s1178 = smul.addr %s1177, 8
        %s1179 = scalar_lea.vmem %s12, %s1178
      $region80: #{tpu_custom_call.1} parent=75 // pred_fallthru
        _
    $region76: #{tpu_custom_call.1} parent=5 // pred_fallthru
      _
  $region6: #{tpu_custom_call.1} parent=0 // loop_footer
    %s22 = sadd.s32 1, %s18
  $region7: #{tpu_custom_call.1} parent=0 // loop_footer_branch
    %17 = sbr.rel target = $region3
  $region8: #{tpu_custom_call.1} parent=0 // loop_exit
    _

</llo_original>
